<compile_context>
chip_gen: v6e
topology: v6e:2x2x1
jax: 0.10.0
libtpu: 0.0.40
codegen_flags: <defaults>
</compile_context>

<pallas_src>
import jax
import jax.numpy as jnp
from jax.experimental import pallas as pl
from jax.experimental.pallas import tpu as pltpu

LANE = 128
SUBLANE = 8


def _round_up(n, m):
    return ((n + m - 1) // m) * m


def _mlp_kernel(x_ref,
                w1_ref, b1_ref,
                w2_ref, b2_ref,
                w3_ref, b3_ref,
                w4_ref, b4_ref,
                w5_ref, b5_ref,
                out_ref):
    """One batch tile of the padded 5-layer MLP.

    x_ref  : (TB, K1p) bf16  activations (lane-dense, zero-padded)
    w*_ref : (Kp, Np)  bf16  zero-padded, pre-transposed weights
    b*_ref : (1, Np)   f32   zero-padded biases (lane-shaped rows)
    out_ref: (TB, 128) f32   sigmoid(logits); only column 0 is meaningful
    """

    def relu_layer(h, w_ref, b_ref):
        acc = jnp.dot(h, w_ref[...], preferred_element_type=jnp.float32)
        acc = acc + b_ref[...]
        # ReLU in f32 (native VPU on all chips incl. v5e), back to bf16 for MXU.
        return jnp.maximum(acc, 0.0).astype(jnp.bfloat16)

    h = x_ref[...]
    h = relu_layer(h, w1_ref, b1_ref)
    h = relu_layer(h, w2_ref, b2_ref)
    h = relu_layer(h, w3_ref, b3_ref)
    h = relu_layer(h, w4_ref, b4_ref)

    logits = jnp.dot(h, w5_ref[...], preferred_element_type=jnp.float32) + b5_ref[...]
    # Single lane-dense full-tile store (no masked vst); padded lanes hold 0.5.
    out_ref[...] = jax.nn.sigmoid(logits)


def element_vs_all_forward(x, params, *, batch_tile=256):
    """x: (batch, input_size) f32. params: list of (W_in_out f32, b f32) pairs."""
    batch, in_size = x.shape
    assert params[0][0].shape[0] == in_size

    # ---- pad every layer to lane-dense widths, cast weights to bf16 ----
    padded = []
    for w, b in params:
        k, n = w.shape
        kp, np_ = _round_up(k, LANE), _round_up(n, LANE)
        wp = jnp.zeros((kp, np_), jnp.bfloat16).at[:k, :n].set(w.astype(jnp.bfloat16))
        bp = jnp.zeros((1, np_), jnp.float32).at[0, :n].set(b.astype(jnp.float32))
        padded.append((wp, bp))

    k1p = padded[0][0].shape[0]        # padded input width
    n_out_p = padded[-1][0].shape[1]   # final width padded to 128

    # ---- pad batch to a multiple of the batch tile, cast to bf16 ----
    tb = batch_tile if batch >= batch_tile else _round_up(batch, SUBLANE)
    bp_total = _round_up(batch, tb)
    xp = jnp.zeros((bp_total, k1p), jnp.bfloat16).at[:batch, :in_size].set(
        x.astype(jnp.bfloat16))

    grid = (bp_total // tb,)

    flat_args = [xp]
    in_specs = [pl.BlockSpec((tb, k1p), lambda i: (i, 0))]
    for wp, bpad in padded:
        flat_args += [wp, bpad]
        # Constant index maps -> weights/biases stay VMEM-resident across the grid.
        in_specs += [pl.BlockSpec(wp.shape, lambda i: (0, 0)),
                     pl.BlockSpec(bpad.shape, lambda i: (0, 0))]

    flops = 2 * bp_total * sum(int(w.shape[0]) * int(w.shape[1]) for w, _ in padded)
    bytes_accessed = (xp.size * 2 + bp_total * n_out_p * 4
                      + sum(int(w.size) * 2 + int(b.size) * 4 for w, b in padded))

    out_padded = pl.pallas_call(
        _mlp_kernel,
        out_shape=jax.ShapeDtypeStruct((bp_total, n_out_p), jnp.float32),
        grid=grid,
        in_specs=in_specs,
        out_specs=pl.BlockSpec((tb, n_out_p), lambda i: (i, 0)),
        compiler_params=pltpu.CompilerParams(
            dimension_semantics=("parallel",)),
        cost_estimate=pl.CostEstimate(
            flops=flops,
            transcendentals=bp_total * n_out_p,
            bytes_accessed=bytes_accessed),
    )(*flat_args)

    pred = out_padded[:batch, 0:1]                       # f32 (batch, 1)
    return jnp.concatenate([1.0 - pred, pred], axis=1)   # (batch, 2)


def init_params(key, input_size, n_features):
    """Parameter init matching the module's layer shapes.

    PyTorch Linear weight is (out, in); we store the transpose (in, out).
    Weights ~ Normal(0, 0.1) (as in the module's __init__); small random biases.
    """
    dims = [input_size,
            input_size // 2,
            input_size // 4,
            input_size // 8,
            n_features,
            1]
    params = []
    for i in range(len(dims) - 1):
        key, kw, kb = jax.random.split(key, 3)
        w = 0.1 * jax.random.normal(kw, (dims[i], dims[i + 1]), dtype=jnp.float32)
        b = 0.05 * jax.random.normal(kb, (dims[i + 1],), dtype=jnp.float32)
        params.append((w, b))
    return params


def reference_forward(x, params):
    """Pure-JAX f32 reference for correctness check."""
    h = x
    for (w, b) in params[:-1]:
        h = jnp.maximum(h @ w + b, 0.0)
    w, b = params[-1]
    pred = jax.nn.sigmoid(h @ w + b)
    return jnp.concatenate([1.0 - pred, pred], axis=1)


if __name__ == "__main__":
    input_size = 256
    n_features = 128
    batch = 512          # 2 grid steps of TB=256 -> exercises the pipelined grid

    key = jax.random.PRNGKey(0)
    key, xkey = jax.random.split(key)
    x = jax.random.normal(xkey, (batch, input_size), dtype=jnp.float32)

    params = init_params(key, input_size, n_features)

    out = element_vs_all_forward(x, params)
    out = jax.block_until_ready(out)

    ref = reference_forward(x, params)
    assert out.shape == (batch, 2), out.shape
    # bf16 weights/activations -> loosened tolerance vs the f32 reference.
    assert jnp.allclose(out, ref, atol=3e-2, rtol=3e-2), (
        float(jnp.max(jnp.abs(out - ref))))
    assert jnp.allclose(out.sum(axis=1), 1.0, atol=1e-5)

    # Also check a small, non-tile-multiple batch path (TB = round_up(batch, 8)).
    x_small = x[:8]
    out_small = jax.block_until_ready(element_vs_all_forward(x_small, params))
    assert out_small.shape == (8, 2)
    assert jnp.allclose(out_small, ref[:8], atol=3e-2, rtol=3e-2)

    print("KERNEL_OK")
</pallas_src>

<mosaic_0001>
module attributes {stable_mosaic.version = 11 : i64} {
  func.func @_mlp_kernel(%arg0: i32, %arg1: memref<256x256xbf16, #tpu.memory_space<vmem>>, %arg2: memref<256x128xbf16, #tpu.memory_space<vmem>>, %arg3: memref<1x128xf32, #tpu.memory_space<vmem>>, %arg4: memref<128x128xbf16, #tpu.memory_space<vmem>>, %arg5: memref<1x128xf32, #tpu.memory_space<vmem>>, %arg6: memref<128x128xbf16, #tpu.memory_space<vmem>>, %arg7: memref<1x128xf32, #tpu.memory_space<vmem>>, %arg8: memref<128x128xbf16, #tpu.memory_space<vmem>>, %arg9: memref<1x128xf32, #tpu.memory_space<vmem>>, %arg10: memref<128x128xbf16, #tpu.memory_space<vmem>>, %arg11: memref<1x128xf32, #tpu.memory_space<vmem>>, %arg12: memref<256x128xf32, #tpu.memory_space<vmem>>) attributes {dimension_semantics = [#tpu.dimension_semantics<parallel>], iteration_bounds = array<i64: 2>, scalar_prefetch = 0 : i64, scratch_operands = 0 : i64, tpu.core_type = #tpu.core_type<tc>, window_params = [{transform_indices = @transform_0, window_bounds = array<i64: 256, 256>}, {pipeline_mode = #tpu.pipeline_mode<synchronous>, transform_indices = @transform_1, window_bounds = array<i64: 256, 128>}, {pipeline_mode = #tpu.pipeline_mode<synchronous>, transform_indices = @transform_2, window_bounds = array<i64: 1, 128>}, {pipeline_mode = #tpu.pipeline_mode<synchronous>, transform_indices = @transform_3, window_bounds = array<i64: 128, 128>}, {pipeline_mode = #tpu.pipeline_mode<synchronous>, transform_indices = @transform_4, window_bounds = array<i64: 1, 128>}, {pipeline_mode = #tpu.pipeline_mode<synchronous>, transform_indices = @transform_5, window_bounds = array<i64: 128, 128>}, {pipeline_mode = #tpu.pipeline_mode<synchronous>, transform_indices = @transform_6, window_bounds = array<i64: 1, 128>}, {pipeline_mode = #tpu.pipeline_mode<synchronous>, transform_indices = @transform_7, window_bounds = array<i64: 128, 128>}, {pipeline_mode = #tpu.pipeline_mode<synchronous>, transform_indices = @transform_8, window_bounds = array<i64: 1, 128>}, {pipeline_mode = #tpu.pipeline_mode<synchronous>, transform_indices = @transform_9, window_bounds = array<i64: 128, 128>}, {pipeline_mode = #tpu.pipeline_mode<synchronous>, transform_indices = @transform_10, window_bounds = array<i64: 1, 128>}, {transform_indices = @transform_11, window_bounds = array<i64: 256, 128>}]} {
    %c0 = arith.constant 0 : index
    %c0_0 = arith.constant 0 : index
    %0 = vector.load %arg1[%c0, %c0_0] : memref<256x256xbf16, #tpu.memory_space<vmem>>, vector<256x256xbf16>
    %c0_1 = arith.constant 0 : index
    %c0_2 = arith.constant 0 : index
    %1 = vector.load %arg2[%c0_1, %c0_2] : memref<256x128xbf16, #tpu.memory_space<vmem>>, vector<256x128xbf16>
    %cst = arith.constant dense<0.000000e+00> : vector<256x128xf32>
    %2 = tpu.matmul %0, %1, %cst {dimension_numbers = #tpu.dot_dimension_numbers<[1], [0], [0], [1], [0, 0, 1, 1], [], []>} : vector<256x256xbf16>, vector<256x128xbf16>, vector<256x128xf32> -> vector<256x128xf32>
    %c0_3 = arith.constant 0 : index
    %c0_4 = arith.constant 0 : index
    %3 = vector.load %arg3[%c0_3, %c0_4] : memref<1x128xf32, #tpu.memory_space<vmem>>, vector<1x128xf32>
    %4 = vector.broadcast %3 : vector<1x128xf32> to vector<256x128xf32>
    %5 = arith.addf %2, %4 : vector<256x128xf32>
    %cst_5 = arith.constant 0.000000e+00 : f32
    %6 = vector.broadcast %cst_5 : f32 to vector<256x128xf32>
    %7 = arith.maximumf %5, %6 : vector<256x128xf32>
    %8 = arith.truncf %7 : vector<256x128xf32> to vector<256x128xbf16>
    %c0_6 = arith.constant 0 : index
    %c0_7 = arith.constant 0 : index
    %9 = vector.load %arg4[%c0_6, %c0_7] : memref<128x128xbf16, #tpu.memory_space<vmem>>, vector<128x128xbf16>
    %cst_8 = arith.constant dense<0.000000e+00> : vector<256x128xf32>
    %10 = tpu.matmul %8, %9, %cst_8 {dimension_numbers = #tpu.dot_dimension_numbers<[1], [0], [0], [1], [0, 0, 1, 1], [], []>} : vector<256x128xbf16>, vector<128x128xbf16>, vector<256x128xf32> -> vector<256x128xf32>
    %c0_9 = arith.constant 0 : index
    %c0_10 = arith.constant 0 : index
    %11 = vector.load %arg5[%c0_9, %c0_10] : memref<1x128xf32, #tpu.memory_space<vmem>>, vector<1x128xf32>
    %12 = vector.broadcast %11 : vector<1x128xf32> to vector<256x128xf32>
    %13 = arith.addf %10, %12 : vector<256x128xf32>
    %cst_11 = arith.constant 0.000000e+00 : f32
    %14 = vector.broadcast %cst_11 : f32 to vector<256x128xf32>
    %15 = arith.maximumf %13, %14 : vector<256x128xf32>
    %16 = arith.truncf %15 : vector<256x128xf32> to vector<256x128xbf16>
    %c0_12 = arith.constant 0 : index
    %c0_13 = arith.constant 0 : index
    %17 = vector.load %arg6[%c0_12, %c0_13] : memref<128x128xbf16, #tpu.memory_space<vmem>>, vector<128x128xbf16>
    %cst_14 = arith.constant dense<0.000000e+00> : vector<256x128xf32>
    %18 = tpu.matmul %16, %17, %cst_14 {dimension_numbers = #tpu.dot_dimension_numbers<[1], [0], [0], [1], [0, 0, 1, 1], [], []>} : vector<256x128xbf16>, vector<128x128xbf16>, vector<256x128xf32> -> vector<256x128xf32>
    %c0_15 = arith.constant 0 : index
    %c0_16 = arith.constant 0 : index
    %19 = vector.load %arg7[%c0_15, %c0_16] : memref<1x128xf32, #tpu.memory_space<vmem>>, vector<1x128xf32>
    %20 = vector.broadcast %19 : vector<1x128xf32> to vector<256x128xf32>
    %21 = arith.addf %18, %20 : vector<256x128xf32>
    %cst_17 = arith.constant 0.000000e+00 : f32
    %22 = vector.broadcast %cst_17 : f32 to vector<256x128xf32>
    %23 = arith.maximumf %21, %22 : vector<256x128xf32>
    %24 = arith.truncf %23 : vector<256x128xf32> to vector<256x128xbf16>
    %c0_18 = arith.constant 0 : index
    %c0_19 = arith.constant 0 : index
    %25 = vector.load %arg8[%c0_18, %c0_19] : memref<128x128xbf16, #tpu.memory_space<vmem>>, vector<128x128xbf16>
    %cst_20 = arith.constant dense<0.000000e+00> : vector<256x128xf32>
    %26 = tpu.matmul %24, %25, %cst_20 {dimension_numbers = #tpu.dot_dimension_numbers<[1], [0], [0], [1], [0, 0, 1, 1], [], []>} : vector<256x128xbf16>, vector<128x128xbf16>, vector<256x128xf32> -> vector<256x128xf32>
    %c0_21 = arith.constant 0 : index
    %c0_22 = arith.constant 0 : index
    %27 = vector.load %arg9[%c0_21, %c0_22] : memref<1x128xf32, #tpu.memory_space<vmem>>, vector<1x128xf32>
    %28 = vector.broadcast %27 : vector<1x128xf32> to vector<256x128xf32>
    %29 = arith.addf %26, %28 : vector<256x128xf32>
    %cst_23 = arith.constant 0.000000e+00 : f32
    %30 = vector.broadcast %cst_23 : f32 to vector<256x128xf32>
    %31 = arith.maximumf %29, %30 : vector<256x128xf32>
    %32 = arith.truncf %31 : vector<256x128xf32> to vector<256x128xbf16>
    %c0_24 = arith.constant 0 : index
    %c0_25 = arith.constant 0 : index
    %33 = vector.load %arg10[%c0_24, %c0_25] : memref<128x128xbf16, #tpu.memory_space<vmem>>, vector<128x128xbf16>
    %cst_26 = arith.constant dense<0.000000e+00> : vector<256x128xf32>
    %34 = tpu.matmul %32, %33, %cst_26 {dimension_numbers = #tpu.dot_dimension_numbers<[1], [0], [0], [1], [0, 0, 1, 1], [], []>} : vector<256x128xbf16>, vector<128x128xbf16>, vector<256x128xf32> -> vector<256x128xf32>
    %c0_27 = arith.constant 0 : index
    %c0_28 = arith.constant 0 : index
    %35 = vector.load %arg11[%c0_27, %c0_28] : memref<1x128xf32, #tpu.memory_space<vmem>>, vector<1x128xf32>
    %36 = vector.broadcast %35 : vector<1x128xf32> to vector<256x128xf32>
    %37 = arith.addf %34, %36 : vector<256x128xf32>
    %38 = arith.negf %37 : vector<256x128xf32>
    %39 = math.exp %38 : vector<256x128xf32>
    %cst_29 = arith.constant 1.000000e+00 : f32
    %40 = vector.broadcast %cst_29 : f32 to vector<256x128xf32>
    %41 = arith.addf %40, %39 : vector<256x128xf32>
    %42 = arith.divf %40, %41 : vector<256x128xf32>
    %c0_30 = arith.constant 0 : index
    %c0_31 = arith.constant 0 : index
    %43 = vector.load %arg12[%c0_30, %c0_31] : memref<256x128xf32, #tpu.memory_space<vmem>>, vector<256x128xf32>
    tpu.vector_store %arg12[%c0_30, %c0_31], %42 {strides = array<i32>} : memref<256x128xf32, #tpu.memory_space<vmem>>, vector<256x128xf32>,
    return
  }
  func.func @transform_0(%arg0: i32) -> (i32, i32) {
    %c0_i32 = arith.constant 0 : i32
    %c0_i32_0 = arith.constant 0 : i32
    return %arg0, %c0_i32 : i32, i32
  }
  func.func @transform_1(%arg0: i32) -> (i32, i32) {
    %c0_i32 = arith.constant 0 : i32
    %c0_i32_0 = arith.constant 0 : i32
    %c0_i32_1 = arith.constant 0 : i32
    return %c0_i32, %c0_i32_0 : i32, i32
  }
  func.func @transform_2(%arg0: i32) -> (i32, i32) {
    %c0_i32 = arith.constant 0 : i32
    %c0_i32_0 = arith.constant 0 : i32
    %c0_i32_1 = arith.constant 0 : i32
    return %c0_i32, %c0_i32_0 : i32, i32
  }
  func.func @transform_3(%arg0: i32) -> (i32, i32) {
    %c0_i32 = arith.constant 0 : i32
    %c0_i32_0 = arith.constant 0 : i32
    %c0_i32_1 = arith.constant 0 : i32
    return %c0_i32, %c0_i32_0 : i32, i32
  }
  func.func @transform_4(%arg0: i32) -> (i32, i32) {
    %c0_i32 = arith.constant 0 : i32
    %c0_i32_0 = arith.constant 0 : i32
    %c0_i32_1 = arith.constant 0 : i32
    return %c0_i32, %c0_i32_0 : i32, i32
  }
  func.func @transform_5(%arg0: i32) -> (i32, i32) {
    %c0_i32 = arith.constant 0 : i32
    %c0_i32_0 = arith.constant 0 : i32
    %c0_i32_1 = arith.constant 0 : i32
    return %c0_i32, %c0_i32_0 : i32, i32
  }
  func.func @transform_6(%arg0: i32) -> (i32, i32) {
    %c0_i32 = arith.constant 0 : i32
    %c0_i32_0 = arith.constant 0 : i32
    %c0_i32_1 = arith.constant 0 : i32
    return %c0_i32, %c0_i32_0 : i32, i32
  }
  func.func @transform_7(%arg0: i32) -> (i32, i32) {
    %c0_i32 = arith.constant 0 : i32
    %c0_i32_0 = arith.constant 0 : i32
    %c0_i32_1 = arith.constant 0 : i32
    return %c0_i32, %c0_i32_0 : i32, i32
  }
  func.func @transform_8(%arg0: i32) -> (i32, i32) {
    %c0_i32 = arith.constant 0 : i32
    %c0_i32_0 = arith.constant 0 : i32
    %c0_i32_1 = arith.constant 0 : i32
    return %c0_i32, %c0_i32_0 : i32, i32
  }
  func.func @transform_9(%arg0: i32) -> (i32, i32) {
    %c0_i32 = arith.constant 0 : i32
    %c0_i32_0 = arith.constant 0 : i32
    %c0_i32_1 = arith.constant 0 : i32
    return %c0_i32, %c0_i32_0 : i32, i32
  }
  func.func @transform_10(%arg0: i32) -> (i32, i32) {
    %c0_i32 = arith.constant 0 : i32
    %c0_i32_0 = arith.constant 0 : i32
    %c0_i32_1 = arith.constant 0 : i32
    return %c0_i32, %c0_i32_0 : i32, i32
  }
  func.func @transform_11(%arg0: i32) -> (i32, i32) {
    %c0_i32 = arith.constant 0 : i32
    %c0_i32_0 = arith.constant 0 : i32
    return %arg0, %c0_i32 : i32, i32
  }
}

</mosaic_0001>

<llo_original>
// kernel: tpu_custom_call.1
$region0: #{tpu_custom_call.1}
  #allocation0 [shape = 'u32[]', space=smem, size = 0x4, offset = 0x4, fixed_abs, tag = 'smem constant byte address 0x4 - core index']
  #allocation1 [shape = 'u32[144,128]{1,0:T(1,128)}', space=vmem, size = 0x12000, scoped, tag = 'internal scratch']
  %s0 = inlined_call_operand.hbm [shape: bf16[512,256], index: 0, kind: input, shape index: {}]
  %s1 = inlined_call_operand.hbm [shape: bf16[256,128], index: 1, kind: input, shape index: {}]
  %s2 = inlined_call_operand.vmem [shape: f32[1,128], index: 2, kind: input, shape index: {}]
  %s3 = inlined_call_operand.hbm [shape: bf16[128,128], index: 3, kind: input, shape index: {}]
  %s4 = inlined_call_operand.vmem [shape: f32[1,128], index: 4, kind: input, shape index: {}]
  %s5 = inlined_call_operand.hbm [shape: bf16[128,128], index: 5, kind: input, shape index: {}]
  %s6 = inlined_call_operand.vmem [shape: f32[1,128], index: 6, kind: input, shape index: {}]
  %s7 = inlined_call_operand.hbm [shape: bf16[128,128], index: 7, kind: input, shape index: {}]
  %s8 = inlined_call_operand.vmem [shape: f32[1,128], index: 8, kind: input, shape index: {}]
  %s9 = inlined_call_operand.hbm [shape: bf16[128,128], index: 9, kind: input, shape index: {}]
  %s10 = inlined_call_operand.vmem [shape: f32[1,128], index: 10, kind: input, shape index: {}]
  %s11 = inlined_call_operand.hbm [shape: f32[512,128], index: 11, kind: output, shape index: {}]
  %s12 = sld [smem:[#allocation0]]
  $region101: #{tpu_custom_call.1} parent=0
    _
  %s14 = ssub.s32 1, %s12
  %s15 = scalar_select 0, %s14, %s12
  $region1: #{tpu_custom_call.1} parent=0
    #allocation2 [shape = 'u8[262144]{0}', space=vmem, size = 0x40000, scoped, tag = 'input window, operand 0']
    #allocation3 [shape = 's32[2]{0}', space=sflag, size = 0x8, scoped, tag = 'scoped memory for tpu_custom_call.1']
    #allocation4 [shape = 's32[2]{0}', space=sflag, size = 0x8, scoped, tag = 'scoped memory for tpu_custom_call.1']
    #allocation5 [shape = 'u8[65536]{0}', space=vmem, size = 0x10000, scoped, tag = 'input window, operand 1, single buffered']
    #allocation6 [shape = 's32[1]{0}', space=sflag, size = 0x4, scoped, tag = 'scoped memory for tpu_custom_call.1']
    #allocation7 [shape = 'u8[32768]{0}', space=vmem, size = 0x8000, scoped, tag = 'input window, operand 3, single buffered']
    #allocation8 [shape = 'u8[32768]{0}', space=vmem, size = 0x8000, scoped, tag = 'input window, operand 5, single buffered']
    #allocation9 [shape = 's32[1]{0}', space=sflag, size = 0x4, scoped, tag = 'scoped memory for tpu_custom_call.1']
    #allocation10 [shape = 'u8[32768]{0}', space=vmem, size = 0x8000, scoped, tag = 'input window, operand 7, single buffered']
    #allocation11 [shape = 'u8[32768]{0}', space=vmem, size = 0x8000, scoped, tag = 'input window, operand 9, single buffered']
    #allocation12 [shape = 's32[1]{0}', space=sflag, size = 0x4, scoped, tag = 'scoped memory for tpu_custom_call.1']
    #allocation13 [shape = 'u8[262144]{0}', space=vmem, size = 0x40000, scoped, tag = 'output window, operand 0']
    %16 = vsyncpa [#allocation3], 0
    %s17 = scalar_lea.sflag [#allocation3], 1
    %18 = vsyncpa %s17, 0
    %19 = vsyncpa [#allocation6], 0
    %20 = vsyncpa [#allocation9], 0
    %21 = vsyncpa [#allocation12], 0
    %22 = vsyncpa [#allocation4], 0
    %s23 = scalar_lea.sflag [#allocation4], 1
    %24 = vsyncpa %s23, 0
    loop: start=0, step=1, limit=4
    $region2: #{tpu_custom_call.1} parent=1 // loop_pre_header
      _
    $region3: #{tpu_custom_call.1} parent=1 // loop_header
      %s26 = sphi 0, %s30
      %p27 = scmp.ge.s32.totalorder %s26, 4
      %s36 = sphi 0, %s38
      %s39 = sphi 0, %s36
      %s40 = sphi 0, %s39
      %s56 = sphi 0, %s40
      %s60 = sphi 0, %s60
      %s62 = sphi 0, %s60
      %s63 = sphi 0, %s62
      %s77 = sphi 0, %s63
      %s81 = sphi 0, %s81
      %s83 = sphi 0, %s81
      %s84 = sphi 0, %s83
      %s98 = sphi 0, %s84
      %s102 = sphi 0, %s102
      %s104 = sphi 0, %s102
      %s105 = sphi 0, %s104
      %s119 = sphi 0, %s105
      %s123 = sphi 0, %s123
      %s125 = sphi 0, %s123
      %s126 = sphi 0, %s125
      %s140 = sphi 0, %s126
      %s144 = sphi 0, %s144
      %s146 = sphi 0, %s144
      %s147 = sphi 0, %s146
      %s161 = sphi 0, %s147
      %s165 = sphi 0, %s165
      %s167 = sphi 0, %s165
      %s168 = sphi 0, %s167
      %s182 = sphi 0, %s168
      %s186 = sphi 0, %s186
      %s188 = sphi 0, %s186
      %s189 = sphi 0, %s188
      %s203 = sphi 0, %s189
      %s207 = sphi 0, %s207
      %s209 = sphi 0, %s207
      %s210 = sphi 0, %s209
      %s224 = sphi 0, %s210
      %s228 = sphi 0, %s228
      %s230 = sphi 0, %s228
      %s231 = sphi 0, %s230
      %s245 = sphi 0, %s231
      %s249 = sphi 0, %s249
      %s251 = sphi 0, %s249
      %s252 = sphi 0, %s251
      %s266 = sphi 0, %s252
      %s272 = sphi 0, %s274
      %s275 = sphi 0, %s272
      %s276 = sphi 0, %s275
      %s292 = sphi 0, %s276
    $region4: #{tpu_custom_call.1} parent=1 // loop_header_branch
      %29 = sbr.rel (%p27) target = $region8
    $region5: #{tpu_custom_call.1} parent=1 // loop_body
      %s31 = ssub.s32 %s26, 1
      %s32 = ssub.s32 %s26, 2
      %s33 = sadd.s32 %s26, 1
      %s34 = ssub.s32 %s26, %s33
      %p35 = scmp.eq.s32.totalorder %s34, 0
      %s37 = sadd.s32 %s36, 1
      %s38 = scalar_select %p35, %s36, %s37
      %p41 = pneg %p35
      %p42 = scmp.eq.s32.totalorder %s26, 1
      %p43 = por %p41, %p42
      %p44 = scmp.ne.s32.totalorder %s36, %s39
      %p45 = scmp.eq.s32.totalorder %s26, 0
      %p46 = por %p44, %p45
      %p47 = scmp.ne.s32.totalorder %s36, %s39
      %p48 = scmp.eq.s32.totalorder %s31, 1
      %p49 = por %p47, %p48
      %p50 = scmp.ne.s32.totalorder %s39, %s40
      %p51 = scmp.eq.s32.totalorder %s31, 0
      %p52 = por %p50, %p51
      %p53 = scmp.ne.s32.totalorder %s39, %s40
      %p54 = scmp.eq.s32.totalorder %s32, 1
      %p55 = por %p53, %p54
      %p57 = scmp.ne.s32.totalorder %s40, %s56
      %p58 = scmp.eq.s32.totalorder %s32, 0
      %p59 = por %p57, %p58
      %s61 = sadd.s32 %s60, 1
      %p64 = scmp.eq.s32.totalorder %s26, 1
      %p65 = scmp.ne.s32.totalorder %s60, %s62
      %p66 = scmp.eq.s32.totalorder %s26, 0
      %p67 = por %p65, %p66
      %p68 = scmp.ne.s32.totalorder %s60, %s62
      %p69 = scmp.eq.s32.totalorder %s31, 1
      %p70 = por %p68, %p69
      %p71 = scmp.ne.s32.totalorder %s62, %s63
      %p72 = scmp.eq.s32.totalorder %s31, 0
      %p73 = por %p71, %p72
      %p74 = scmp.ne.s32.totalorder %s62, %s63
      %p75 = scmp.eq.s32.totalorder %s32, 1
      %p76 = por %p74, %p75
      %p78 = scmp.ne.s32.totalorder %s63, %s77
      %p79 = scmp.eq.s32.totalorder %s32, 0
      %p80 = por %p78, %p79
      %s82 = sadd.s32 %s81, 1
      %p85 = scmp.eq.s32.totalorder %s26, 1
      %p86 = scmp.ne.s32.totalorder %s81, %s83
      %p87 = scmp.eq.s32.totalorder %s26, 0
      %p88 = por %p86, %p87
      %p89 = scmp.ne.s32.totalorder %s81, %s83
      %p90 = scmp.eq.s32.totalorder %s31, 1
      %p91 = por %p89, %p90
      %p92 = scmp.ne.s32.totalorder %s83, %s84
      %p93 = scmp.eq.s32.totalorder %s31, 0
      %p94 = por %p92, %p93
      %p95 = scmp.ne.s32.totalorder %s83, %s84
      %p96 = scmp.eq.s32.totalorder %s32, 1
      %p97 = por %p95, %p96
      %p99 = scmp.ne.s32.totalorder %s84, %s98
      %p100 = scmp.eq.s32.totalorder %s32, 0
      %p101 = por %p99, %p100
      %s103 = sadd.s32 %s102, 1
      %p106 = scmp.eq.s32.totalorder %s26, 1
      %p107 = scmp.ne.s32.totalorder %s102, %s104
      %p108 = scmp.eq.s32.totalorder %s26, 0
      %p109 = por %p107, %p108
      %p110 = scmp.ne.s32.totalorder %s102, %s104
      %p111 = scmp.eq.s32.totalorder %s31, 1
      %p112 = por %p110, %p111
      %p113 = scmp.ne.s32.totalorder %s104, %s105
      %p114 = scmp.eq.s32.totalorder %s31, 0
      %p115 = por %p113, %p114
      %p116 = scmp.ne.s32.totalorder %s104, %s105
      %p117 = scmp.eq.s32.totalorder %s32, 1
      %p118 = por %p116, %p117
      %p120 = scmp.ne.s32.totalorder %s105, %s119
      %p121 = scmp.eq.s32.totalorder %s32, 0
      %p122 = por %p120, %p121
      %s124 = sadd.s32 %s123, 1
      %p127 = scmp.eq.s32.totalorder %s26, 1
      %p128 = scmp.ne.s32.totalorder %s123, %s125
      %p129 = scmp.eq.s32.totalorder %s26, 0
      %p130 = por %p128, %p129
      %p131 = scmp.ne.s32.totalorder %s123, %s125
      %p132 = scmp.eq.s32.totalorder %s31, 1
      %p133 = por %p131, %p132
      %p134 = scmp.ne.s32.totalorder %s125, %s126
      %p135 = scmp.eq.s32.totalorder %s31, 0
      %p136 = por %p134, %p135
      %p137 = scmp.ne.s32.totalorder %s125, %s126
      %p138 = scmp.eq.s32.totalorder %s32, 1
      %p139 = por %p137, %p138
      %p141 = scmp.ne.s32.totalorder %s126, %s140
      %p142 = scmp.eq.s32.totalorder %s32, 0
      %p143 = por %p141, %p142
      %s145 = sadd.s32 %s144, 1
      %p148 = scmp.eq.s32.totalorder %s26, 1
      %p149 = scmp.ne.s32.totalorder %s144, %s146
      %p150 = scmp.eq.s32.totalorder %s26, 0
      %p151 = por %p149, %p150
      %p152 = scmp.ne.s32.totalorder %s144, %s146
      %p153 = scmp.eq.s32.totalorder %s31, 1
      %p154 = por %p152, %p153
      %p155 = scmp.ne.s32.totalorder %s146, %s147
      %p156 = scmp.eq.s32.totalorder %s31, 0
      %p157 = por %p155, %p156
      %p158 = scmp.ne.s32.totalorder %s146, %s147
      %p159 = scmp.eq.s32.totalorder %s32, 1
      %p160 = por %p158, %p159
      %p162 = scmp.ne.s32.totalorder %s147, %s161
      %p163 = scmp.eq.s32.totalorder %s32, 0
      %p164 = por %p162, %p163
      %s166 = sadd.s32 %s165, 1
      %p169 = scmp.eq.s32.totalorder %s26, 1
      %p170 = scmp.ne.s32.totalorder %s165, %s167
      %p171 = scmp.eq.s32.totalorder %s26, 0
      %p172 = por %p170, %p171
      %p173 = scmp.ne.s32.totalorder %s165, %s167
      %p174 = scmp.eq.s32.totalorder %s31, 1
      %p175 = por %p173, %p174
      %p176 = scmp.ne.s32.totalorder %s167, %s168
      %p177 = scmp.eq.s32.totalorder %s31, 0
      %p178 = por %p176, %p177
      %p179 = scmp.ne.s32.totalorder %s167, %s168
      %p180 = scmp.eq.s32.totalorder %s32, 1
      %p181 = por %p179, %p180
      %p183 = scmp.ne.s32.totalorder %s168, %s182
      %p184 = scmp.eq.s32.totalorder %s32, 0
      %p185 = por %p183, %p184
      %s187 = sadd.s32 %s186, 1
      %p190 = scmp.eq.s32.totalorder %s26, 1
      %p191 = scmp.ne.s32.totalorder %s186, %s188
      %p192 = scmp.eq.s32.totalorder %s26, 0
      %p193 = por %p191, %p192
      %p194 = scmp.ne.s32.totalorder %s186, %s188
      %p195 = scmp.eq.s32.totalorder %s31, 1
      %p196 = por %p194, %p195
      %p197 = scmp.ne.s32.totalorder %s188, %s189
      %p198 = scmp.eq.s32.totalorder %s31, 0
      %p199 = por %p197, %p198
      %p200 = scmp.ne.s32.totalorder %s188, %s189
      %p201 = scmp.eq.s32.totalorder %s32, 1
      %p202 = por %p200, %p201
      %p204 = scmp.ne.s32.totalorder %s189, %s203
      %p205 = scmp.eq.s32.totalorder %s32, 0
      %p206 = por %p204, %p205
      %s208 = sadd.s32 %s207, 1
      %p211 = scmp.eq.s32.totalorder %s26, 1
      %p212 = scmp.ne.s32.totalorder %s207, %s209
      %p213 = scmp.eq.s32.totalorder %s26, 0
      %p214 = por %p212, %p213
      %p215 = scmp.ne.s32.totalorder %s207, %s209
      %p216 = scmp.eq.s32.totalorder %s31, 1
      %p217 = por %p215, %p216
      %p218 = scmp.ne.s32.totalorder %s209, %s210
      %p219 = scmp.eq.s32.totalorder %s31, 0
      %p220 = por %p218, %p219
      %p221 = scmp.ne.s32.totalorder %s209, %s210
      %p222 = scmp.eq.s32.totalorder %s32, 1
      %p223 = por %p221, %p222
      %p225 = scmp.ne.s32.totalorder %s210, %s224
      %p226 = scmp.eq.s32.totalorder %s32, 0
      %p227 = por %p225, %p226
      %s229 = sadd.s32 %s228, 1
      %p232 = scmp.eq.s32.totalorder %s26, 1
      %p233 = scmp.ne.s32.totalorder %s228, %s230
      %p234 = scmp.eq.s32.totalorder %s26, 0
      %p235 = por %p233, %p234
      %p236 = scmp.ne.s32.totalorder %s228, %s230
      %p237 = scmp.eq.s32.totalorder %s31, 1
      %p238 = por %p236, %p237
      %p239 = scmp.ne.s32.totalorder %s230, %s231
      %p240 = scmp.eq.s32.totalorder %s31, 0
      %p241 = por %p239, %p240
      %p242 = scmp.ne.s32.totalorder %s230, %s231
      %p243 = scmp.eq.s32.totalorder %s32, 1
      %p244 = por %p242, %p243
      %p246 = scmp.ne.s32.totalorder %s231, %s245
      %p247 = scmp.eq.s32.totalorder %s32, 0
      %p248 = por %p246, %p247
      %s250 = sadd.s32 %s249, 1
      %p253 = scmp.eq.s32.totalorder %s26, 1
      %p254 = scmp.ne.s32.totalorder %s249, %s251
      %p255 = scmp.eq.s32.totalorder %s26, 0
      %p256 = por %p254, %p255
      %p257 = scmp.ne.s32.totalorder %s249, %s251
      %p258 = scmp.eq.s32.totalorder %s31, 1
      %p259 = por %p257, %p258
      %p260 = scmp.ne.s32.totalorder %s251, %s252
      %p261 = scmp.eq.s32.totalorder %s31, 0
      %p262 = por %p260, %p261
      %p263 = scmp.ne.s32.totalorder %s251, %s252
      %p264 = scmp.eq.s32.totalorder %s32, 1
      %p265 = por %p263, %p264
      %p267 = scmp.ne.s32.totalorder %s252, %s266
      %p268 = scmp.eq.s32.totalorder %s32, 0
      %p269 = por %p267, %p268
      %s270 = ssub.s32 %s26, %s33
      %p271 = scmp.eq.s32.totalorder %s270, 0
      %s273 = sadd.s32 %s272, 1
      %s274 = scalar_select %p271, %s272, %s273
      %p277 = pneg %p271
      %p278 = scmp.eq.s32.totalorder %s26, 1
      %p279 = por %p277, %p278
      %p280 = scmp.ne.s32.totalorder %s272, %s275
      %p281 = scmp.eq.s32.totalorder %s26, 0
      %p282 = por %p280, %p281
      %p283 = scmp.ne.s32.totalorder %s272, %s275
      %p284 = scmp.eq.s32.totalorder %s31, 1
      %p285 = por %p283, %p284
      %p286 = scmp.ne.s32.totalorder %s275, %s276
      %p287 = scmp.eq.s32.totalorder %s31, 0
      %p288 = por %p286, %p287
      %p289 = scmp.ne.s32.totalorder %s275, %s276
      %p290 = scmp.eq.s32.totalorder %s32, 1
      %p291 = por %p289, %p290
      %p293 = scmp.ne.s32.totalorder %s276, %s292
      %p294 = scmp.eq.s32.totalorder %s32, 0
      %p295 = por %p293, %p294
      %p296 = scmp.le.s32.totalorder 1, %s26
      %p297 = scmp.lt.s32.totalorder %s26, 3
      %p298 = pnand %p296, %p297
      %p299 = pneg %p298
      // Predicated region
      $region9: #{tpu_custom_call.1} parent=5 // pred_check
        _
      $region10: #{tpu_custom_call.1} parent=5 // pred_check_branch
        %301 = sbr.rel (%p298) target = $region12
      $region11: #{tpu_custom_call.1} parent=5 // pred_region
        %s302 = ssub.s32 %s26, 1
        // Predicated region
        $region13: #{tpu_custom_call.1} parent=11 // pred_check
          %p303 = pneg %p73
        $region14: #{tpu_custom_call.1} parent=11 // pred_check_branch
          %305 = sbr.rel (%p303) target = $region16
        $region15: #{tpu_custom_call.1} parent=11 // pred_region
          %s307 = ssub.s32 2048, 2048
          %308 = vsyncadd [#allocation6], %s307
          %s309 = sshll.u32 [#allocation5], 4
          %s310 = int_to_ptr.vmem [resolvable:$true] %s309
          %315 = dma.hbm_to_vmem [thread:$0]  %s1, 2048, %s310, [#allocation6], 64, 64, 4
        $region16: #{tpu_custom_call.1} parent=11 // pred_fallthru
          _
        // Predicated region
        $region17: #{tpu_custom_call.1} parent=11 // pred_check
          %p316 = pneg %p94
        $region18: #{tpu_custom_call.1} parent=11 // pred_check_branch
          %318 = sbr.rel (%p316) target = $region20
        $region19: #{tpu_custom_call.1} parent=11 // pred_region
          _
        $region20: #{tpu_custom_call.1} parent=11 // pred_fallthru
          _
        // Predicated region
        $region21: #{tpu_custom_call.1} parent=11 // pred_check
          %p319 = pneg %p115
        $region22: #{tpu_custom_call.1} parent=11 // pred_check_branch
          %321 = sbr.rel (%p319) target = $region24
        $region23: #{tpu_custom_call.1} parent=11 // pred_region
          %s323 = ssub.s32 1024, 1024
          %324 = vsyncadd [#allocation6], %s323
          %s325 = sshll.u32 [#allocation7], 4
          %s326 = int_to_ptr.vmem [resolvable:$true] %s325
          %331 = dma.hbm_to_vmem [thread:$0]  %s3, 1024, %s326, [#allocation6], 64, 64, 4
        $region24: #{tpu_custom_call.1} parent=11 // pred_fallthru
          _
        // Predicated region
        $region25: #{tpu_custom_call.1} parent=11 // pred_check
          %p332 = pneg %p136
        $region26: #{tpu_custom_call.1} parent=11 // pred_check_branch
          %334 = sbr.rel (%p332) target = $region28
        $region27: #{tpu_custom_call.1} parent=11 // pred_region
          _
        $region28: #{tpu_custom_call.1} parent=11 // pred_fallthru
          _
        // Predicated region
        $region29: #{tpu_custom_call.1} parent=11 // pred_check
          %p335 = pneg %p157
        $region30: #{tpu_custom_call.1} parent=11 // pred_check_branch
          %337 = sbr.rel (%p335) target = $region32
        $region31: #{tpu_custom_call.1} parent=11 // pred_region
          %s339 = ssub.s32 1024, 1024
          %340 = vsyncadd [#allocation9], %s339
          %s341 = sshll.u32 [#allocation8], 4
          %s342 = int_to_ptr.vmem [resolvable:$true] %s341
          %347 = dma.hbm_to_vmem [thread:$0]  %s5, 1024, %s342, [#allocation9], 64, 64, 4
        $region32: #{tpu_custom_call.1} parent=11 // pred_fallthru
          _
        // Predicated region
        $region33: #{tpu_custom_call.1} parent=11 // pred_check
          %p348 = pneg %p178
        $region34: #{tpu_custom_call.1} parent=11 // pred_check_branch
          %350 = sbr.rel (%p348) target = $region36
        $region35: #{tpu_custom_call.1} parent=11 // pred_region
          _
        $region36: #{tpu_custom_call.1} parent=11 // pred_fallthru
          _
        // Predicated region
        $region37: #{tpu_custom_call.1} parent=11 // pred_check
          %p351 = pneg %p199
        $region38: #{tpu_custom_call.1} parent=11 // pred_check_branch
          %353 = sbr.rel (%p351) target = $region40
        $region39: #{tpu_custom_call.1} parent=11 // pred_region
          %s355 = ssub.s32 1024, 1024
          %356 = vsyncadd [#allocation9], %s355
          %s357 = sshll.u32 [#allocation10], 4
          %s358 = int_to_ptr.vmem [resolvable:$true] %s357
          %363 = dma.hbm_to_vmem [thread:$0]  %s7, 1024, %s358, [#allocation9], 64, 64, 4
        $region40: #{tpu_custom_call.1} parent=11 // pred_fallthru
          _
        // Predicated region
        $region41: #{tpu_custom_call.1} parent=11 // pred_check
          %p364 = pneg %p220
        $region42: #{tpu_custom_call.1} parent=11 // pred_check_branch
          %366 = sbr.rel (%p364) target = $region44
        $region43: #{tpu_custom_call.1} parent=11 // pred_region
          _
        $region44: #{tpu_custom_call.1} parent=11 // pred_fallthru
          _
        // Predicated region
        $region45: #{tpu_custom_call.1} parent=11 // pred_check
          %p367 = pneg %p241
        $region46: #{tpu_custom_call.1} parent=11 // pred_check_branch
          %369 = sbr.rel (%p367) target = $region48
        $region47: #{tpu_custom_call.1} parent=11 // pred_region
          %s371 = ssub.s32 1024, 1024
          %372 = vsyncadd [#allocation12], %s371
          %s373 = sshll.u32 [#allocation11], 4
          %s374 = int_to_ptr.vmem [resolvable:$true] %s373
          %379 = dma.hbm_to_vmem [thread:$0]  %s9, 1024, %s374, [#allocation12], 64, 64, 4
        $region48: #{tpu_custom_call.1} parent=11 // pred_fallthru
          _
        // Predicated region
        $region49: #{tpu_custom_call.1} parent=11 // pred_check
          %p380 = pneg %p262
        $region50: #{tpu_custom_call.1} parent=11 // pred_check_branch
          %382 = sbr.rel (%p380) target = $region52
        $region51: #{tpu_custom_call.1} parent=11 // pred_region
          _
        $region52: #{tpu_custom_call.1} parent=11 // pred_fallthru
          _
      $region12: #{tpu_custom_call.1} parent=5 // pred_fallthru
        _
      %p383 = scmp.lt.s32.totalorder %s26, 2
      // Predicated region
      $region53: #{tpu_custom_call.1} parent=5 // pred_check
        %p384 = pneg %p383
      $region54: #{tpu_custom_call.1} parent=5 // pred_check_branch
        %386 = sbr.rel (%p384) target = $region56
      $region55: #{tpu_custom_call.1} parent=5 // pred_region
        // Predicated region
        $region57: #{tpu_custom_call.1} parent=55 // pred_check
          %p387 = pneg %p46
        $region58: #{tpu_custom_call.1} parent=55 // pred_check_branch
          %389 = sbr.rel (%p387) target = $region60
        $region59: #{tpu_custom_call.1} parent=55 // pred_region
          %s390 = sand.u32 %s36, 1
          %s391 = scalar_lea.sflag [#allocation3], %s390
          %s392 = sand.u32 %s36, 1
          %s393 = smul.addr %s392, 256
          %s394 = scalar_lea.vmem [#allocation2], %s393
          %s395 = smul.u32 32, %s26
          %s397 = ssub.s32 4096, 4096
          %398 = vsyncadd %s391, %s397
          %s399 = smul.addr %s395, 2
          %s400 = smul.addr %s399, 64
          %s401 = scalar_lea.hbm %s0, %s400
          %s402 = sshll.u32 %s394, 4
          %s403 = int_to_ptr.vmem [resolvable:$true] %s402
          %408 = dma.hbm_to_vmem [thread:$0]  %s401, 4096, %s403, %s391, 128, 128, 8
        $region60: #{tpu_custom_call.1} parent=55 // pred_fallthru
          _
      $region56: #{tpu_custom_call.1} parent=5 // pred_fallthru
        _
      %p409 = scmp.le.s32.totalorder 1, %s26
      %p410 = scmp.lt.s32.totalorder %s26, 3
      %p411 = pnand %p409, %p410
      %p412 = pneg %p411
      // Predicated region
      $region61: #{tpu_custom_call.1} parent=5 // pred_check
        _
      $region62: #{tpu_custom_call.1} parent=5 // pred_check_branch
        %414 = sbr.rel (%p411) target = $region64
      $region63: #{tpu_custom_call.1} parent=5 // pred_region
        %s415 = ssub.s32 %s26, 1
        %s416 = sand.u32 %s39, 1
        %s417 = scalar_lea.sflag [#allocation3], %s416
        %s418 = sand.u32 %s39, 1
        %s419 = smul.addr %s418, 256
        %s420 = scalar_lea.vmem [#allocation2], %s419
        // Predicated region
        $region65: #{tpu_custom_call.1} parent=63 // pred_check
          %p421 = pneg %p52
        $region66: #{tpu_custom_call.1} parent=63 // pred_check_branch
          %423 = sbr.rel (%p421) target = $region68
        $region67: #{tpu_custom_call.1} parent=63 // pred_region
          %424 = dma.done %s417, 4096
        $region68: #{tpu_custom_call.1} parent=63 // pred_fallthru
          _
        // Predicated region
        $region69: #{tpu_custom_call.1} parent=63 // pred_check
          %p425 = pneg %p73
        $region70: #{tpu_custom_call.1} parent=63 // pred_check_branch
          %427 = sbr.rel (%p425) target = $region72
        $region71: #{tpu_custom_call.1} parent=63 // pred_region
          %428 = dma.done [#allocation6], 2048
        $region72: #{tpu_custom_call.1} parent=63 // pred_fallthru
          _
        // Predicated region
        $region73: #{tpu_custom_call.1} parent=63 // pred_check
          %p429 = pneg %p115
        $region74: #{tpu_custom_call.1} parent=63 // pred_check_branch
          %431 = sbr.rel (%p429) target = $region76
        $region75: #{tpu_custom_call.1} parent=63 // pred_region
          %432 = dma.done [#allocation6], 1024
        $region76: #{tpu_custom_call.1} parent=63 // pred_fallthru
          _
        // Predicated region
        $region77: #{tpu_custom_call.1} parent=63 // pred_check
          %p433 = pneg %p157
        $region78: #{tpu_custom_call.1} parent=63 // pred_check_branch
          %435 = sbr.rel (%p433) target = $region80
        $region79: #{tpu_custom_call.1} parent=63 // pred_region
          %436 = dma.done [#allocation9], 1024
        $region80: #{tpu_custom_call.1} parent=63 // pred_fallthru
          _
        // Predicated region
        $region81: #{tpu_custom_call.1} parent=63 // pred_check
          %p437 = pneg %p199
        $region82: #{tpu_custom_call.1} parent=63 // pred_check_branch
          %439 = sbr.rel (%p437) target = $region84
        $region83: #{tpu_custom_call.1} parent=63 // pred_region
          %440 = dma.done [#allocation9], 1024
        $region84: #{tpu_custom_call.1} parent=63 // pred_fallthru
          _
        // Predicated region
        $region85: #{tpu_custom_call.1} parent=63 // pred_check
          %p441 = pneg %p241
        $region86: #{tpu_custom_call.1} parent=63 // pred_check_branch
          %443 = sbr.rel (%p441) target = $region88
        $region87: #{tpu_custom_call.1} parent=63 // pred_region
          %444 = dma.done [#allocation12], 1024
        $region88: #{tpu_custom_call.1} parent=63 // pred_fallthru
          _
        %s445 = sand.u32 %s39, 1
        %s446 = scalar_lea.sflag [#allocation3], %s445
        %s447 = sand.u32 %s39, 1
        %s448 = smul.addr %s447, 256
        %s449 = scalar_lea.vmem [#allocation2], %s448
        %p450 = pneg %p52
        %p451 = pneg %p49
        %p452 = pneg %p73
        %p453 = pneg %p70
        %p454 = pneg %p94
        %p455 = pneg %p91
        %p456 = pneg %p115
        %p457 = pneg %p112
        %p458 = pneg %p136
        %p459 = pneg %p133
        %p460 = pneg %p157
        %p461 = pneg %p154
        %p462 = pneg %p178
        %p463 = pneg %p175
        %p464 = pneg %p199
        %p465 = pneg %p196
        %p466 = pneg %p220
        %p467 = pneg %p217
        %p468 = pneg %p241
        %p469 = pneg %p238
        %p470 = pneg %p262
        %p471 = pneg %p259
        %p472 = pneg %p288
        %p473 = pneg %p285
        %s474 = sand.u32 %s275, 1
        %s475 = scalar_lea.sflag [#allocation4], %s474
        %s476 = sand.u32 %s275, 1
        %s477 = smul.addr %s476, 256
        %s478 = scalar_lea.vmem [#allocation13], %s477
        %s479 = smul.u32 32, %s31
        %s480 = smul.u32 32, %s31
        %v482 = vld [vmem:[%s420] sm:$0xff]
        %v483 = vld [vmem:[%s420 + $0x8] sm:$0xff]
        %v484 = vld [vmem:[%s420 + $0x10] sm:$0xff]
        %v485 = vld [vmem:[%s420 + $0x18] sm:$0xff]
        %v486 = vld [vmem:[%s420 + $0x20] sm:$0xff]
        %v487 = vld [vmem:[%s420 + $0x28] sm:$0xff]
        %v488 = vld [vmem:[%s420 + $0x30] sm:$0xff]
        %v489 = vld [vmem:[%s420 + $0x38] sm:$0xff]
        %v490 = vld [vmem:[%s420 + $0x40] sm:$0xff]
        %v491 = vld [vmem:[%s420 + $0x48] sm:$0xff]
        %v492 = vld [vmem:[%s420 + $0x50] sm:$0xff]
        %v493 = vld [vmem:[%s420 + $0x58] sm:$0xff]
        %v494 = vld [vmem:[%s420 + $0x60] sm:$0xff]
        %v495 = vld [vmem:[%s420 + $0x68] sm:$0xff]
        %v496 = vld [vmem:[%s420 + $0x70] sm:$0xff]
        %v497 = vld [vmem:[%s420 + $0x78] sm:$0xff]
        %v498 = vld [vmem:[%s420 + $0x80] sm:$0xff]
        %v499 = vld [vmem:[%s420 + $0x88] sm:$0xff]
        %v500 = vld [vmem:[%s420 + $0x90] sm:$0xff]
        %v501 = vld [vmem:[%s420 + $0x98] sm:$0xff]
        %v502 = vld [vmem:[%s420 + $0xa0] sm:$0xff]
        %v503 = vld [vmem:[%s420 + $0xa8] sm:$0xff]
        %v504 = vld [vmem:[%s420 + $0xb0] sm:$0xff]
        %v505 = vld [vmem:[%s420 + $0xb8] sm:$0xff]
        %v506 = vld [vmem:[%s420 + $0xc0] sm:$0xff]
        %v507 = vld [vmem:[%s420 + $0xc8] sm:$0xff]
        %v508 = vld [vmem:[%s420 + $0xd0] sm:$0xff]
        %v509 = vld [vmem:[%s420 + $0xd8] sm:$0xff]
        %v510 = vld [vmem:[%s420 + $0xe0] sm:$0xff]
        %v511 = vld [vmem:[%s420 + $0xe8] sm:$0xff]
        %v512 = vld [vmem:[%s420 + $0xf0] sm:$0xff]
        %v513 = vld [vmem:[%s420 + $0xf8] sm:$0xff]
        %v514 = vld [vmem:[#allocation5] sm:$0xf]
        %v515 = vld [vmem:[#allocation5 + $0x4] sm:$0xf]
        %v516 = vld [vmem:[#allocation5 + $0x8] sm:$0xf]
        %v517 = vld [vmem:[#allocation5 + $0xc] sm:$0xf]
        %v518 = vld [vmem:[#allocation5 + $0x10] sm:$0xf]
        %v519 = vld [vmem:[#allocation5 + $0x14] sm:$0xf]
        %v520 = vld [vmem:[#allocation5 + $0x18] sm:$0xf]
        %v521 = vld [vmem:[#allocation5 + $0x1c] sm:$0xf]
        %v522 = vld [vmem:[#allocation5 + $0x20] sm:$0xf]
        %v523 = vld [vmem:[#allocation5 + $0x24] sm:$0xf]
        %v524 = vld [vmem:[#allocation5 + $0x28] sm:$0xf]
        %v525 = vld [vmem:[#allocation5 + $0x2c] sm:$0xf]
        %v526 = vld [vmem:[#allocation5 + $0x30] sm:$0xf]
        %v527 = vld [vmem:[#allocation5 + $0x34] sm:$0xf]
        %v528 = vld [vmem:[#allocation5 + $0x38] sm:$0xf]
        %v529 = vld [vmem:[#allocation5 + $0x3c] sm:$0xf]
        %v530 = vld [vmem:[#allocation5 + $0x40] sm:$0xf]
        %v531 = vld [vmem:[#allocation5 + $0x44] sm:$0xf]
        %v532 = vld [vmem:[#allocation5 + $0x48] sm:$0xf]
        %v533 = vld [vmem:[#allocation5 + $0x4c] sm:$0xf]
        %v534 = vld [vmem:[#allocation5 + $0x50] sm:$0xf]
        %v535 = vld [vmem:[#allocation5 + $0x54] sm:$0xf]
        %v536 = vld [vmem:[#allocation5 + $0x58] sm:$0xf]
        %v537 = vld [vmem:[#allocation5 + $0x5c] sm:$0xf]
        %v538 = vld [vmem:[#allocation5 + $0x60] sm:$0xf]
        %v539 = vld [vmem:[#allocation5 + $0x64] sm:$0xf]
        %v540 = vld [vmem:[#allocation5 + $0x68] sm:$0xf]
        %v541 = vld [vmem:[#allocation5 + $0x6c] sm:$0xf]
        %v542 = vld [vmem:[#allocation5 + $0x70] sm:$0xf]
        %v543 = vld [vmem:[#allocation5 + $0x74] sm:$0xf]
        %v544 = vld [vmem:[#allocation5 + $0x78] sm:$0xf]
        %v545 = vld [vmem:[#allocation5 + $0x7c] sm:$0xf]
        %v546 = vld [vmem:[%s2] sm:$0x1]
        %v548 = vlaneseq
        %v549 = vshrl.u32 %v548, 7
        %v550 = vsub.s32 0, %v549
        %v551 = vrot.slane %v546, %v550
        %v585 = vunpack.c.l.b16 %v482
        %v586 = vunpack.c.h.b16 %v482
        %v587 = vunpack.c.l.b16 %v483
        %v588 = vunpack.c.h.b16 %v483
        %v589 = vunpack.c.l.b16 %v484
        %v590 = vunpack.c.h.b16 %v484
        %v591 = vunpack.c.l.b16 %v485
        %v592 = vunpack.c.h.b16 %v485
        %v593 = vunpack.c.l.b16 %v486
        %v594 = vunpack.c.h.b16 %v486
        %v595 = vunpack.c.l.b16 %v487
        %v596 = vunpack.c.h.b16 %v487
        %v597 = vunpack.c.l.b16 %v488
        %v598 = vunpack.c.h.b16 %v488
        %v599 = vunpack.c.l.b16 %v489
        %v600 = vunpack.c.h.b16 %v489
        %v601 = vunpack.c.l.b16 %v490
        %v602 = vunpack.c.h.b16 %v490
        %v603 = vunpack.c.l.b16 %v491
        %v604 = vunpack.c.h.b16 %v491
        %v605 = vunpack.c.l.b16 %v492
        %v606 = vunpack.c.h.b16 %v492
        %v607 = vunpack.c.l.b16 %v493
        %v608 = vunpack.c.h.b16 %v493
        %v609 = vunpack.c.l.b16 %v494
        %v610 = vunpack.c.h.b16 %v494
        %v611 = vunpack.c.l.b16 %v495
        %v612 = vunpack.c.h.b16 %v495
        %v613 = vunpack.c.l.b16 %v496
        %v614 = vunpack.c.h.b16 %v496
        %v615 = vunpack.c.l.b16 %v497
        %v616 = vunpack.c.h.b16 %v497
        %v617 = vunpack.c.l.b16 %v498
        %v618 = vunpack.c.h.b16 %v498
        %v619 = vunpack.c.l.b16 %v499
        %v620 = vunpack.c.h.b16 %v499
        %v621 = vunpack.c.l.b16 %v500
        %v622 = vunpack.c.h.b16 %v500
        %v623 = vunpack.c.l.b16 %v501
        %v624 = vunpack.c.h.b16 %v501
        %v625 = vunpack.c.l.b16 %v502
        %v626 = vunpack.c.h.b16 %v502
        %v627 = vunpack.c.l.b16 %v503
        %v628 = vunpack.c.h.b16 %v503
        %v629 = vunpack.c.l.b16 %v504
        %v630 = vunpack.c.h.b16 %v504
        %v631 = vunpack.c.l.b16 %v505
        %v632 = vunpack.c.h.b16 %v505
        %v633 = vunpack.c.l.b16 %v506
        %v634 = vunpack.c.h.b16 %v506
        %v635 = vunpack.c.l.b16 %v507
        %v636 = vunpack.c.h.b16 %v507
        %v637 = vunpack.c.l.b16 %v508
        %v638 = vunpack.c.h.b16 %v508
        %v639 = vunpack.c.l.b16 %v509
        %v640 = vunpack.c.h.b16 %v509
        %v641 = vunpack.c.l.b16 %v510
        %v642 = vunpack.c.h.b16 %v510
        %v643 = vunpack.c.l.b16 %v511
        %v644 = vunpack.c.h.b16 %v511
        %v645 = vunpack.c.l.b16 %v512
        %v646 = vunpack.c.h.b16 %v512
        %v647 = vunpack.c.l.b16 %v513
        %v648 = vunpack.c.h.b16 %v513
        %v649 = vpack.c.b16 %v587, %v585
        %v650 = vpack.c.b16 %v588, %v586
        %v651 = vpack.c.b16 %v591, %v589
        %v652 = vpack.c.b16 %v592, %v590
        %v653 = vpack.c.b16 %v595, %v593
        %v654 = vpack.c.b16 %v596, %v594
        %v655 = vpack.c.b16 %v599, %v597
        %v656 = vpack.c.b16 %v600, %v598
        %v657 = vpack.c.b16 %v603, %v601
        %v658 = vpack.c.b16 %v604, %v602
        %v659 = vpack.c.b16 %v607, %v605
        %v660 = vpack.c.b16 %v608, %v606
        %v661 = vpack.c.b16 %v611, %v609
        %v662 = vpack.c.b16 %v612, %v610
        %v663 = vpack.c.b16 %v615, %v613
        %v664 = vpack.c.b16 %v616, %v614
        %v665 = vpack.c.b16 %v619, %v617
        %v666 = vpack.c.b16 %v620, %v618
        %v667 = vpack.c.b16 %v623, %v621
        %v668 = vpack.c.b16 %v624, %v622
        %v669 = vpack.c.b16 %v627, %v625
        %v670 = vpack.c.b16 %v628, %v626
        %v671 = vpack.c.b16 %v631, %v629
        %v672 = vpack.c.b16 %v632, %v630
        %v673 = vpack.c.b16 %v635, %v633
        %v674 = vpack.c.b16 %v636, %v634
        %v675 = vpack.c.b16 %v639, %v637
        %v676 = vpack.c.b16 %v640, %v638
        %v677 = vpack.c.b16 %v643, %v641
        %v678 = vpack.c.b16 %v644, %v642
        %v679 = vpack.c.b16 %v647, %v645
        %v680 = vpack.c.b16 %v648, %v646
        %v745 = vunpack.c.l.b16 %v514
        %v746 = vunpack.c.l.b16 %v515
        %v747 = vunpack.c.l.b16 %v516
        %v748 = vunpack.c.l.b16 %v517
        %v749 = vunpack.c.l.b16 %v518
        %v750 = vunpack.c.l.b16 %v519
        %v751 = vunpack.c.l.b16 %v520
        %v752 = vunpack.c.l.b16 %v521
        %v753 = vunpack.c.l.b16 %v522
        %v754 = vunpack.c.l.b16 %v523
        %v755 = vunpack.c.l.b16 %v524
        %v756 = vunpack.c.l.b16 %v525
        %v757 = vunpack.c.l.b16 %v526
        %v758 = vunpack.c.l.b16 %v527
        %v759 = vunpack.c.l.b16 %v528
        %v760 = vunpack.c.l.b16 %v529
        %v761 = vunpack.c.l.b16 %v530
        %v762 = vunpack.c.l.b16 %v531
        %v763 = vunpack.c.l.b16 %v532
        %v764 = vunpack.c.l.b16 %v533
        %v765 = vunpack.c.l.b16 %v534
        %v766 = vunpack.c.l.b16 %v535
        %v767 = vunpack.c.l.b16 %v536
        %v768 = vunpack.c.l.b16 %v537
        %v769 = vunpack.c.l.b16 %v538
        %v770 = vunpack.c.l.b16 %v539
        %v771 = vunpack.c.l.b16 %v540
        %v772 = vunpack.c.l.b16 %v541
        %v773 = vunpack.c.l.b16 %v542
        %v774 = vunpack.c.l.b16 %v543
        %v775 = vunpack.c.l.b16 %v544
        %v776 = vunpack.c.l.b16 %v545
        %v777 = vpack.c.b16 %v746, %v745
        %v778 = vpack.c.b16 %v748, %v747
        %v779 = vpack.c.b16 %v750, %v749
        %v780 = vpack.c.b16 %v752, %v751
        %v781 = vpack.c.b16 %v754, %v753
        %v782 = vpack.c.b16 %v756, %v755
        %v783 = vpack.c.b16 %v758, %v757
        %v784 = vpack.c.b16 %v760, %v759
        %v785 = vpack.c.b16 %v762, %v761
        %v786 = vpack.c.b16 %v764, %v763
        %v787 = vpack.c.b16 %v766, %v765
        %v788 = vpack.c.b16 %v768, %v767
        %v789 = vpack.c.b16 %v770, %v769
        %v790 = vpack.c.b16 %v772, %v771
        %v791 = vpack.c.b16 %v774, %v773
        %v792 = vpack.c.b16 %v776, %v775
        %809 = vmatprep.subr.bf16.mxu0 0
        %810 = vmatpush1.bf16.msra.mxu0 %v784
        %811 = vmatprep.subr.bf16.mxu0 0
        %812 = vmatpush1.bf16.msra.mxu0 %v783
        %813 = vmatprep.subr.bf16.mxu0 0
        %814 = vmatpush1.bf16.msra.mxu0 %v782
        %815 = vmatprep.subr.bf16.mxu0 0
        %816 = vmatpush1.bf16.msra.mxu0 %v781
        %817 = vmatprep.subr.bf16.mxu0 0
        %818 = vmatpush1.bf16.msra.mxu0 %v780
        %819 = vmatprep.subr.bf16.mxu0 0
        %820 = vmatpush1.bf16.msra.mxu0 %v779
        %821 = vmatprep.subr.bf16.mxu0 0
        %822 = vmatpush1.bf16.msra.mxu0 %v778
        %823 = vmatprep.subr.bf16.mxu0 0
        %824 = vmatpush1.bf16.msra.mxu0 %v777
        %825 = vmatprep.subr.bf16.mxu0 0
        %826 = vmatpush2.bf16.msra.mxu0 %v792
        %827 = vmatprep.subr.bf16.mxu0 0
        %828 = vmatpush2.bf16.msra.mxu0 %v791
        %829 = vmatprep.subr.bf16.mxu0 0
        %830 = vmatpush2.bf16.msra.mxu0 %v790
        %831 = vmatprep.subr.bf16.mxu0 0
        %832 = vmatpush2.bf16.msra.mxu0 %v789
        %833 = vmatprep.subr.bf16.mxu0 0
        %834 = vmatpush2.bf16.msra.mxu0 %v788
        %835 = vmatprep.subr.bf16.mxu0 0
        %836 = vmatpush2.bf16.msra.mxu0 %v787
        %837 = vmatprep.subr.bf16.mxu0 0
        %838 = vmatpush2.bf16.msra.mxu0 %v786
        %839 = vmatprep.subr.bf16.mxu0 0
        %840 = vmatpush2.bf16.msra.mxu0 %v785
        %841 = vmatprep.mubr.bf16.mxu0 %v650
        %842 = vmatmul.mubr.bf16.gmra.mxu0 %v649
        %v843 = vpop.f32.mrf.mxu0
        %v844 = vadd.f32 %v551, %v843
        %v845 = vpop.f32.mrf.mxu0
        %v846 = vpop.f32.mrf.mxu0
        %v847 = vadd.f32 %v551, %v846
        %v848 = vpop.f32.mrf.mxu0
        %849 = vmatprep.mubr.bf16.mxu0 %v652
        %850 = vmatmul.mubr.bf16.gmra.mxu0 %v651
        %v851 = vpop.f32.mrf.mxu0
        %v852 = vadd.f32 %v551, %v851
        %v853 = vpop.f32.mrf.mxu0
        %v854 = vpop.f32.mrf.mxu0
        %v855 = vadd.f32 %v551, %v854
        %v856 = vpop.f32.mrf.mxu0
        %857 = vmatprep.mubr.bf16.mxu0 %v654
        %858 = vmatmul.mubr.bf16.gmra.mxu0 %v653
        %v859 = vpop.f32.mrf.mxu0
        %v860 = vadd.f32 %v551, %v859
        %v861 = vpop.f32.mrf.mxu0
        %v862 = vpop.f32.mrf.mxu0
        %v863 = vadd.f32 %v551, %v862
        %v864 = vpop.f32.mrf.mxu0
        %865 = vmatprep.mubr.bf16.mxu0 %v656
        %866 = vmatmul.mubr.bf16.gmra.mxu0 %v655
        %v867 = vpop.f32.mrf.mxu0
        %v868 = vadd.f32 %v551, %v867
        %v869 = vpop.f32.mrf.mxu0
        %v870 = vpop.f32.mrf.mxu0
        %v871 = vadd.f32 %v551, %v870
        %v872 = vpop.f32.mrf.mxu0
        %873 = vmatprep.mubr.bf16.mxu0 %v658
        %874 = vmatmul.mubr.bf16.gmra.mxu0 %v657
        %v875 = vpop.f32.mrf.mxu0
        %v876 = vadd.f32 %v551, %v875
        %v877 = vpop.f32.mrf.mxu0
        %v878 = vpop.f32.mrf.mxu0
        %v879 = vadd.f32 %v551, %v878
        %v880 = vpop.f32.mrf.mxu0
        %881 = vmatprep.mubr.bf16.mxu0 %v660
        %882 = vmatmul.mubr.bf16.gmra.mxu0 %v659
        %v883 = vpop.f32.mrf.mxu0
        %v884 = vadd.f32 %v551, %v883
        %v885 = vpop.f32.mrf.mxu0
        %v886 = vpop.f32.mrf.mxu0
        %v887 = vadd.f32 %v551, %v886
        %v888 = vpop.f32.mrf.mxu0
        %889 = vmatprep.mubr.bf16.mxu0 %v662
        %890 = vmatmul.mubr.bf16.gmra.mxu0 %v661
        %v891 = vpop.f32.mrf.mxu0
        %v892 = vadd.f32 %v551, %v891
        %v893 = vpop.f32.mrf.mxu0
        %v894 = vpop.f32.mrf.mxu0
        %v895 = vadd.f32 %v551, %v894
        %v896 = vpop.f32.mrf.mxu0
        %897 = vmatprep.mubr.bf16.mxu0 %v664
        %898 = vmatmul.mubr.bf16.gmra.mxu0 %v663
        %v899 = vpop.f32.mrf.mxu0
        %v900 = vadd.f32 %v551, %v899
        %v901 = vpop.f32.mrf.mxu0
        %v902 = vpop.f32.mrf.mxu0
        %v903 = vadd.f32 %v551, %v902
        %v904 = vpop.f32.mrf.mxu0
        %905 = vmatprep.mubr.bf16.mxu0 %v666
        %906 = vmatmul.mubr.bf16.gmra.mxu0 %v665
        %v907 = vpop.f32.mrf.mxu0
        %v908 = vadd.f32 %v551, %v907
        %v909 = vpop.f32.mrf.mxu0
        %v910 = vpop.f32.mrf.mxu0
        %v911 = vadd.f32 %v551, %v910
        %v912 = vpop.f32.mrf.mxu0
        %913 = vmatprep.mubr.bf16.mxu0 %v668
        %914 = vmatmul.mubr.bf16.gmra.mxu0 %v667
        %v915 = vpop.f32.mrf.mxu0
        %v916 = vadd.f32 %v551, %v915
        %v917 = vpop.f32.mrf.mxu0
        %v918 = vpop.f32.mrf.mxu0
        %v919 = vadd.f32 %v551, %v918
        %v920 = vpop.f32.mrf.mxu0
        %921 = vmatprep.mubr.bf16.mxu0 %v670
        %922 = vmatmul.mubr.bf16.gmra.mxu0 %v669
        %v923 = vpop.f32.mrf.mxu0
        %v924 = vadd.f32 %v551, %v923
        %v925 = vpop.f32.mrf.mxu0
        %v926 = vpop.f32.mrf.mxu0
        %v927 = vadd.f32 %v551, %v926
        %v928 = vpop.f32.mrf.mxu0
        %929 = vmatprep.mubr.bf16.mxu0 %v672
        %930 = vmatmul.mubr.bf16.gmra.mxu0 %v671
        %v931 = vpop.f32.mrf.mxu0
        %v932 = vadd.f32 %v551, %v931
        %v933 = vpop.f32.mrf.mxu0
        %v934 = vpop.f32.mrf.mxu0
        %v935 = vadd.f32 %v551, %v934
        %v936 = vpop.f32.mrf.mxu0
        %937 = vmatprep.mubr.bf16.mxu0 %v674
        %938 = vmatmul.mubr.bf16.gmra.mxu0 %v673
        %v939 = vpop.f32.mrf.mxu0
        %v940 = vadd.f32 %v551, %v939
        %v941 = vpop.f32.mrf.mxu0
        %v942 = vpop.f32.mrf.mxu0
        %v943 = vadd.f32 %v551, %v942
        %v944 = vpop.f32.mrf.mxu0
        %945 = vmatprep.mubr.bf16.mxu0 %v676
        %946 = vmatmul.mubr.bf16.gmra.mxu0 %v675
        %v947 = vpop.f32.mrf.mxu0
        %v948 = vadd.f32 %v551, %v947
        %v949 = vpop.f32.mrf.mxu0
        %v950 = vpop.f32.mrf.mxu0
        %v951 = vadd.f32 %v551, %v950
        %v952 = vpop.f32.mrf.mxu0
        %953 = vmatprep.mubr.bf16.mxu0 %v678
        %954 = vmatmul.mubr.bf16.gmra.mxu0 %v677
        %v955 = vpop.f32.mrf.mxu0
        %v956 = vadd.f32 %v551, %v955
        %v957 = vpop.f32.mrf.mxu0
        %v958 = vpop.f32.mrf.mxu0
        %v959 = vadd.f32 %v551, %v958
        %v960 = vpop.f32.mrf.mxu0
        %961 = vmatprep.mubr.bf16.mxu0 %v680
        %962 = vmatmul.mubr.bf16.gmra.mxu0 %v679
        %v963 = vpop.f32.mrf.mxu0
        %v964 = vadd.f32 %v551, %v963
        %v965 = vpop.f32.mrf.mxu0
        %v966 = vpop.f32.mrf.mxu0
        %v967 = vadd.f32 %v551, %v966
        %v968 = vpop.f32.mrf.mxu0
        %969 = vdwg.mxu0
        %v970 = vmax.f32 %v844, 0.0
        %v971 = vmax.f32 %v847, 0.0
        %v972 = vmax.f32 %v852, 0.0
        %v973 = vmax.f32 %v855, 0.0
        %v974 = vmax.f32 %v860, 0.0
        %v975 = vmax.f32 %v863, 0.0
        %v976 = vmax.f32 %v868, 0.0
        %v977 = vmax.f32 %v871, 0.0
        %v978 = vmax.f32 %v876, 0.0
        %v979 = vmax.f32 %v879, 0.0
        %v980 = vmax.f32 %v884, 0.0
        %v981 = vmax.f32 %v887, 0.0
        %v982 = vmax.f32 %v892, 0.0
        %v983 = vmax.f32 %v895, 0.0
        %v984 = vmax.f32 %v900, 0.0
        %v985 = vmax.f32 %v903, 0.0
        %v986 = vmax.f32 %v908, 0.0
        %v987 = vmax.f32 %v911, 0.0
        %v988 = vmax.f32 %v916, 0.0
        %v989 = vmax.f32 %v919, 0.0
        %v990 = vmax.f32 %v924, 0.0
        %v991 = vmax.f32 %v927, 0.0
        %v992 = vmax.f32 %v932, 0.0
        %v993 = vmax.f32 %v935, 0.0
        %v994 = vmax.f32 %v940, 0.0
        %v995 = vmax.f32 %v943, 0.0
        %v996 = vmax.f32 %v948, 0.0
        %v997 = vmax.f32 %v951, 0.0
        %v998 = vmax.f32 %v956, 0.0
        %v999 = vmax.f32 %v959, 0.0
        %v1000 = vmax.f32 %v964, 0.0
        %v1001 = vmax.f32 %v967, 0.0
        %v1002 = vpack.c.bf16 %v971, %v970
        %v1003 = vpack.c.bf16 %v973, %v972
        %v1004 = vpack.c.bf16 %v975, %v974
        %v1005 = vpack.c.bf16 %v977, %v976
        %v1006 = vpack.c.bf16 %v979, %v978
        %v1007 = vpack.c.bf16 %v981, %v980
        %v1008 = vpack.c.bf16 %v983, %v982
        %v1009 = vpack.c.bf16 %v985, %v984
        %v1010 = vpack.c.bf16 %v987, %v986
        %v1011 = vpack.c.bf16 %v989, %v988
        %v1012 = vpack.c.bf16 %v991, %v990
        %v1013 = vpack.c.bf16 %v993, %v992
        %v1014 = vpack.c.bf16 %v995, %v994
        %v1015 = vpack.c.bf16 %v997, %v996
        %v1016 = vpack.c.bf16 %v999, %v998
        %v1017 = vpack.c.bf16 %v1001, %v1000
        %v1018 = vld [vmem:[#allocation7] sm:$0xf]
        %v1019 = vld [vmem:[#allocation7 + $0x4] sm:$0xf]
        %v1020 = vld [vmem:[#allocation7 + $0x8] sm:$0xf]
        %v1021 = vld [vmem:[#allocation7 + $0xc] sm:$0xf]
        %v1022 = vld [vmem:[#allocation7 + $0x10] sm:$0xf]
        %v1023 = vld [vmem:[#allocation7 + $0x14] sm:$0xf]
        %v1024 = vld [vmem:[#allocation7 + $0x18] sm:$0xf]
        %v1025 = vld [vmem:[#allocation7 + $0x1c] sm:$0xf]
        %v1026 = vld [vmem:[#allocation7 + $0x20] sm:$0xf]
        %v1027 = vld [vmem:[#allocation7 + $0x24] sm:$0xf]
        %v1028 = vld [vmem:[#allocation7 + $0x28] sm:$0xf]
        %v1029 = vld [vmem:[#allocation7 + $0x2c] sm:$0xf]
        %v1030 = vld [vmem:[#allocation7 + $0x30] sm:$0xf]
        %v1031 = vld [vmem:[#allocation7 + $0x34] sm:$0xf]
        %v1032 = vld [vmem:[#allocation7 + $0x38] sm:$0xf]
        %v1033 = vld [vmem:[#allocation7 + $0x3c] sm:$0xf]
        %v1034 = vld [vmem:[%s4] sm:$0x1]
        %v1036 = vlaneseq
        %v1037 = vshrl.u32 %v1036, 7
        %v1038 = vsub.s32 0, %v1037
        %v1039 = vrot.slane %v1034, %v1038
        %v1057 = vunpack.c.l.b16 %v1018
        %v1058 = vunpack.c.l.b16 %v1019
        %v1059 = vunpack.c.l.b16 %v1020
        %v1060 = vunpack.c.l.b16 %v1021
        %v1061 = vunpack.c.l.b16 %v1022
        %v1062 = vunpack.c.l.b16 %v1023
        %v1063 = vunpack.c.l.b16 %v1024
        %v1064 = vunpack.c.l.b16 %v1025
        %v1065 = vunpack.c.l.b16 %v1026
        %v1066 = vunpack.c.l.b16 %v1027
        %v1067 = vunpack.c.l.b16 %v1028
        %v1068 = vunpack.c.l.b16 %v1029
        %v1069 = vunpack.c.l.b16 %v1030
        %v1070 = vunpack.c.l.b16 %v1031
        %v1071 = vunpack.c.l.b16 %v1032
        %v1072 = vunpack.c.l.b16 %v1033
        %v1073 = vpack.c.b16 %v1058, %v1057
        %v1074 = vpack.c.b16 %v1060, %v1059
        %v1075 = vpack.c.b16 %v1062, %v1061
        %v1076 = vpack.c.b16 %v1064, %v1063
        %v1077 = vpack.c.b16 %v1066, %v1065
        %v1078 = vpack.c.b16 %v1068, %v1067
        %v1079 = vpack.c.b16 %v1070, %v1069
        %v1080 = vpack.c.b16 %v1072, %v1071
        %1089 = vmatprep.subr.bf16.mxu0 0
        %1090 = vmatpush1.bf16.msra.mxu0 %v1080
        %1091 = vmatprep.subr.bf16.mxu0 0
        %1092 = vmatpush1.bf16.msra.mxu0 %v1079
        %1093 = vmatprep.subr.bf16.mxu0 0
        %1094 = vmatpush1.bf16.msra.mxu0 %v1078
        %1095 = vmatprep.subr.bf16.mxu0 0
        %1096 = vmatpush1.bf16.msra.mxu0 %v1077
        %1097 = vmatprep.subr.bf16.mxu0 0
        %1098 = vmatpush1.bf16.msra.mxu0 %v1076
        %1099 = vmatprep.subr.bf16.mxu0 0
        %1100 = vmatpush1.bf16.msra.mxu0 %v1075
        %1101 = vmatprep.subr.bf16.mxu0 0
        %1102 = vmatpush1.bf16.msra.mxu0 %v1074
        %1103 = vmatprep.subr.bf16.mxu0 0
        %1104 = vmatpush1.bf16.msra.mxu0 %v1073
        %1105 = vmatprep.subr.bf16.mxu0 0
        %1106 = vmatpush2.bf16.msra.mxu0 0
        %1107 = vmatprep.subr.bf16.mxu0 0
        %1108 = vmatpush2.bf16.msra.mxu0 0
        %1109 = vmatprep.subr.bf16.mxu0 0
        %1110 = vmatpush2.bf16.msra.mxu0 0
        %1111 = vmatprep.subr.bf16.mxu0 0
        %1112 = vmatpush2.bf16.msra.mxu0 0
        %1113 = vmatprep.subr.bf16.mxu0 0
        %1114 = vmatpush2.bf16.msra.mxu0 0
        %1115 = vmatprep.subr.bf16.mxu0 0
        %1116 = vmatpush2.bf16.msra.mxu0 0
        %1117 = vmatprep.subr.bf16.mxu0 0
        %1118 = vmatpush2.bf16.msra.mxu0 0
        %1119 = vmatprep.subr.bf16.mxu0 0
        %1120 = vmatpush2.bf16.msra.mxu0 0
        %1121 = vmatprep.mubr.bf16.mxu0 0
        %1122 = vmatmul.mubr.bf16.gmra.mxu0 %v1002
        %v1123 = vpop.f32.mrf.mxu0
        %v1124 = vadd.f32 %v1039, %v1123
        %v1125 = vpop.f32.mrf.mxu0
        %v1126 = vpop.f32.mrf.mxu0
        %v1127 = vadd.f32 %v1039, %v1126
        %v1128 = vpop.f32.mrf.mxu0
        %1129 = vmatprep.mubr.bf16.mxu0 0
        %1130 = vmatmul.mubr.bf16.gmra.mxu0 %v1003
        %v1131 = vpop.f32.mrf.mxu0
        %v1132 = vadd.f32 %v1039, %v1131
        %v1133 = vpop.f32.mrf.mxu0
        %v1134 = vpop.f32.mrf.mxu0
        %v1135 = vadd.f32 %v1039, %v1134
        %v1136 = vpop.f32.mrf.mxu0
        %1137 = vmatprep.mubr.bf16.mxu0 0
        %1138 = vmatmul.mubr.bf16.gmra.mxu0 %v1004
        %v1139 = vpop.f32.mrf.mxu0
        %v1140 = vadd.f32 %v1039, %v1139
        %v1141 = vpop.f32.mrf.mxu0
        %v1142 = vpop.f32.mrf.mxu0
        %v1143 = vadd.f32 %v1039, %v1142
        %v1144 = vpop.f32.mrf.mxu0
        %1145 = vmatprep.mubr.bf16.mxu0 0
        %1146 = vmatmul.mubr.bf16.gmra.mxu0 %v1005
        %v1147 = vpop.f32.mrf.mxu0
        %v1148 = vadd.f32 %v1039, %v1147
        %v1149 = vpop.f32.mrf.mxu0
        %v1150 = vpop.f32.mrf.mxu0
        %v1151 = vadd.f32 %v1039, %v1150
        %v1152 = vpop.f32.mrf.mxu0
        %1153 = vmatprep.mubr.bf16.mxu0 0
        %1154 = vmatmul.mubr.bf16.gmra.mxu0 %v1006
        %v1155 = vpop.f32.mrf.mxu0
        %v1156 = vadd.f32 %v1039, %v1155
        %v1157 = vpop.f32.mrf.mxu0
        %v1158 = vpop.f32.mrf.mxu0
        %v1159 = vadd.f32 %v1039, %v1158
        %v1160 = vpop.f32.mrf.mxu0
        %1161 = vmatprep.mubr.bf16.mxu0 0
        %1162 = vmatmul.mubr.bf16.gmra.mxu0 %v1007
        %v1163 = vpop.f32.mrf.mxu0
        %v1164 = vadd.f32 %v1039, %v1163
        %v1165 = vpop.f32.mrf.mxu0
        %v1166 = vpop.f32.mrf.mxu0
        %v1167 = vadd.f32 %v1039, %v1166
        %v1168 = vpop.f32.mrf.mxu0
        %1169 = vmatprep.mubr.bf16.mxu0 0
        %1170 = vmatmul.mubr.bf16.gmra.mxu0 %v1008
        %v1171 = vpop.f32.mrf.mxu0
        %v1172 = vadd.f32 %v1039, %v1171
        %v1173 = vpop.f32.mrf.mxu0
        %v1174 = vpop.f32.mrf.mxu0
        %v1175 = vadd.f32 %v1039, %v1174
        %v1176 = vpop.f32.mrf.mxu0
        %1177 = vmatprep.mubr.bf16.mxu0 0
        %1178 = vmatmul.mubr.bf16.gmra.mxu0 %v1009
        %v1179 = vpop.f32.mrf.mxu0
        %v1180 = vadd.f32 %v1039, %v1179
        %v1181 = vpop.f32.mrf.mxu0
        %v1182 = vpop.f32.mrf.mxu0
        %v1183 = vadd.f32 %v1039, %v1182
        %v1184 = vpop.f32.mrf.mxu0
        %1185 = vmatprep.mubr.bf16.mxu0 0
        %1186 = vmatmul.mubr.bf16.gmra.mxu0 %v1010
        %v1187 = vpop.f32.mrf.mxu0
        %v1188 = vadd.f32 %v1039, %v1187
        %v1189 = vpop.f32.mrf.mxu0
        %v1190 = vpop.f32.mrf.mxu0
        %v1191 = vadd.f32 %v1039, %v1190
        %v1192 = vpop.f32.mrf.mxu0
        %1193 = vmatprep.mubr.bf16.mxu0 0
        %1194 = vmatmul.mubr.bf16.gmra.mxu0 %v1011
        %v1195 = vpop.f32.mrf.mxu0
        %v1196 = vadd.f32 %v1039, %v1195
        %v1197 = vpop.f32.mrf.mxu0
        %v1198 = vpop.f32.mrf.mxu0
        %v1199 = vadd.f32 %v1039, %v1198
        %v1200 = vpop.f32.mrf.mxu0
        %1201 = vmatprep.mubr.bf16.mxu0 0
        %1202 = vmatmul.mubr.bf16.gmra.mxu0 %v1012
        %v1203 = vpop.f32.mrf.mxu0
        %v1204 = vadd.f32 %v1039, %v1203
        %v1205 = vpop.f32.mrf.mxu0
        %v1206 = vpop.f32.mrf.mxu0
        %v1207 = vadd.f32 %v1039, %v1206
        %v1208 = vpop.f32.mrf.mxu0
        %1209 = vmatprep.mubr.bf16.mxu0 0
        %1210 = vmatmul.mubr.bf16.gmra.mxu0 %v1013
        %v1211 = vpop.f32.mrf.mxu0
        %v1212 = vadd.f32 %v1039, %v1211
        %v1213 = vpop.f32.mrf.mxu0
        %v1214 = vpop.f32.mrf.mxu0
        %v1215 = vadd.f32 %v1039, %v1214
        %v1216 = vpop.f32.mrf.mxu0
        %1217 = vmatprep.mubr.bf16.mxu0 0
        %1218 = vmatmul.mubr.bf16.gmra.mxu0 %v1014
        %v1219 = vpop.f32.mrf.mxu0
        %v1220 = vadd.f32 %v1039, %v1219
        %v1221 = vpop.f32.mrf.mxu0
        %v1222 = vpop.f32.mrf.mxu0
        %v1223 = vadd.f32 %v1039, %v1222
        %v1224 = vpop.f32.mrf.mxu0
        %1225 = vmatprep.mubr.bf16.mxu0 0
        %1226 = vmatmul.mubr.bf16.gmra.mxu0 %v1015
        %v1227 = vpop.f32.mrf.mxu0
        %v1228 = vadd.f32 %v1039, %v1227
        %v1229 = vpop.f32.mrf.mxu0
        %v1230 = vpop.f32.mrf.mxu0
        %v1231 = vadd.f32 %v1039, %v1230
        %v1232 = vpop.f32.mrf.mxu0
        %1233 = vmatprep.mubr.bf16.mxu0 0
        %1234 = vmatmul.mubr.bf16.gmra.mxu0 %v1016
        %v1235 = vpop.f32.mrf.mxu0
        %v1236 = vadd.f32 %v1039, %v1235
        %v1237 = vpop.f32.mrf.mxu0
        %v1238 = vpop.f32.mrf.mxu0
        %v1239 = vadd.f32 %v1039, %v1238
        %v1240 = vpop.f32.mrf.mxu0
        %1241 = vmatprep.mubr.bf16.mxu0 0
        %1242 = vmatmul.mubr.bf16.gmra.mxu0 %v1017
        %v1243 = vpop.f32.mrf.mxu0
        %v1244 = vadd.f32 %v1039, %v1243
        %v1245 = vpop.f32.mrf.mxu0
        %v1246 = vpop.f32.mrf.mxu0
        %v1247 = vadd.f32 %v1039, %v1246
        %v1248 = vpop.f32.mrf.mxu0
        %1249 = vdwg.mxu0
        %v1250 = vmax.f32 %v1124, 0.0
        %v1251 = vmax.f32 %v1127, 0.0
        %v1252 = vmax.f32 %v1132, 0.0
        %v1253 = vmax.f32 %v1135, 0.0
        %v1254 = vmax.f32 %v1140, 0.0
        %v1255 = vmax.f32 %v1143, 0.0
        %v1256 = vmax.f32 %v1148, 0.0
        %v1257 = vmax.f32 %v1151, 0.0
        %v1258 = vmax.f32 %v1156, 0.0
        %v1259 = vmax.f32 %v1159, 0.0
        %v1260 = vmax.f32 %v1164, 0.0
        %v1261 = vmax.f32 %v1167, 0.0
        %v1262 = vmax.f32 %v1172, 0.0
        %v1263 = vmax.f32 %v1175, 0.0
        %v1264 = vmax.f32 %v1180, 0.0
        %v1265 = vmax.f32 %v1183, 0.0
        %v1266 = vmax.f32 %v1188, 0.0
        %v1267 = vmax.f32 %v1191, 0.0
        %v1268 = vmax.f32 %v1196, 0.0
        %v1269 = vmax.f32 %v1199, 0.0
        %v1270 = vmax.f32 %v1204, 0.0
        %v1271 = vmax.f32 %v1207, 0.0
        %v1272 = vmax.f32 %v1212, 0.0
        %v1273 = vmax.f32 %v1215, 0.0
        %v1274 = vmax.f32 %v1220, 0.0
        %v1275 = vmax.f32 %v1223, 0.0
        %v1276 = vmax.f32 %v1228, 0.0
        %v1277 = vmax.f32 %v1231, 0.0
        %v1278 = vmax.f32 %v1236, 0.0
        %v1279 = vmax.f32 %v1239, 0.0
        %v1280 = vmax.f32 %v1244, 0.0
        %v1281 = vmax.f32 %v1247, 0.0
        %v1282 = vpack.c.bf16 %v1251, %v1250
        %v1283 = vpack.c.bf16 %v1253, %v1252
        %v1284 = vpack.c.bf16 %v1255, %v1254
        %v1285 = vpack.c.bf16 %v1257, %v1256
        %v1286 = vpack.c.bf16 %v1259, %v1258
        %v1287 = vpack.c.bf16 %v1261, %v1260
        %v1288 = vpack.c.bf16 %v1263, %v1262
        %v1289 = vpack.c.bf16 %v1265, %v1264
        %v1290 = vpack.c.bf16 %v1267, %v1266
        %v1291 = vpack.c.bf16 %v1269, %v1268
        %v1292 = vpack.c.bf16 %v1271, %v1270
        %v1293 = vpack.c.bf16 %v1273, %v1272
        %v1294 = vpack.c.bf16 %v1275, %v1274
        %v1295 = vpack.c.bf16 %v1277, %v1276
        %v1296 = vpack.c.bf16 %v1279, %v1278
        %v1297 = vpack.c.bf16 %v1281, %v1280
        %v1298 = vld [vmem:[#allocation8] sm:$0xf]
        %v1299 = vld [vmem:[#allocation8 + $0x4] sm:$0xf]
        %v1300 = vld [vmem:[#allocation8 + $0x8] sm:$0xf]
        %v1301 = vld [vmem:[#allocation8 + $0xc] sm:$0xf]
        %v1302 = vld [vmem:[#allocation8 + $0x10] sm:$0xf]
        %v1303 = vld [vmem:[#allocation8 + $0x14] sm:$0xf]
        %v1304 = vld [vmem:[#allocation8 + $0x18] sm:$0xf]
        %v1305 = vld [vmem:[#allocation8 + $0x1c] sm:$0xf]
        %v1306 = vld [vmem:[#allocation8 + $0x20] sm:$0xf]
        %v1307 = vld [vmem:[#allocation8 + $0x24] sm:$0xf]
        %v1308 = vld [vmem:[#allocation8 + $0x28] sm:$0xf]
        %v1309 = vld [vmem:[#allocation8 + $0x2c] sm:$0xf]
        %v1310 = vld [vmem:[#allocation8 + $0x30] sm:$0xf]
        %v1311 = vld [vmem:[#allocation8 + $0x34] sm:$0xf]
        %v1312 = vld [vmem:[#allocation8 + $0x38] sm:$0xf]
        %v1313 = vld [vmem:[#allocation8 + $0x3c] sm:$0xf]
        %v1314 = vld [vmem:[%s6] sm:$0x1]
        %v1316 = vlaneseq
        %v1317 = vshrl.u32 %v1316, 7
        %v1318 = vsub.s32 0, %v1317
        %v1319 = vrot.slane %v1314, %v1318
        %v1337 = vunpack.c.l.b16 %v1298
        %v1338 = vunpack.c.l.b16 %v1299
        %v1339 = vunpack.c.l.b16 %v1300
        %v1340 = vunpack.c.l.b16 %v1301
        %v1341 = vunpack.c.l.b16 %v1302
        %v1342 = vunpack.c.l.b16 %v1303
        %v1343 = vunpack.c.l.b16 %v1304
        %v1344 = vunpack.c.l.b16 %v1305
        %v1345 = vunpack.c.l.b16 %v1306
        %v1346 = vunpack.c.l.b16 %v1307
        %v1347 = vunpack.c.l.b16 %v1308
        %v1348 = vunpack.c.l.b16 %v1309
        %v1349 = vunpack.c.l.b16 %v1310
        %v1350 = vunpack.c.l.b16 %v1311
        %v1351 = vunpack.c.l.b16 %v1312
        %v1352 = vunpack.c.l.b16 %v1313
        %v1353 = vpack.c.b16 %v1338, %v1337
        %v1354 = vpack.c.b16 %v1340, %v1339
        %v1355 = vpack.c.b16 %v1342, %v1341
        %v1356 = vpack.c.b16 %v1344, %v1343
        %v1357 = vpack.c.b16 %v1346, %v1345
        %v1358 = vpack.c.b16 %v1348, %v1347
        %v1359 = vpack.c.b16 %v1350, %v1349
        %v1360 = vpack.c.b16 %v1352, %v1351
        %1369 = vmatprep.subr.bf16.mxu0 0
        %1370 = vmatpush1.bf16.msra.mxu0 %v1360
        %1371 = vmatprep.subr.bf16.mxu0 0
        %1372 = vmatpush1.bf16.msra.mxu0 %v1359
        %1373 = vmatprep.subr.bf16.mxu0 0
        %1374 = vmatpush1.bf16.msra.mxu0 %v1358
        %1375 = vmatprep.subr.bf16.mxu0 0
        %1376 = vmatpush1.bf16.msra.mxu0 %v1357
        %1377 = vmatprep.subr.bf16.mxu0 0
        %1378 = vmatpush1.bf16.msra.mxu0 %v1356
        %1379 = vmatprep.subr.bf16.mxu0 0
        %1380 = vmatpush1.bf16.msra.mxu0 %v1355
        %1381 = vmatprep.subr.bf16.mxu0 0
        %1382 = vmatpush1.bf16.msra.mxu0 %v1354
        %1383 = vmatprep.subr.bf16.mxu0 0
        %1384 = vmatpush1.bf16.msra.mxu0 %v1353
        %1385 = vmatprep.subr.bf16.mxu0 0
        %1386 = vmatpush2.bf16.msra.mxu0 0
        %1387 = vmatprep.subr.bf16.mxu0 0
        %1388 = vmatpush2.bf16.msra.mxu0 0
        %1389 = vmatprep.subr.bf16.mxu0 0
        %1390 = vmatpush2.bf16.msra.mxu0 0
        %1391 = vmatprep.subr.bf16.mxu0 0
        %1392 = vmatpush2.bf16.msra.mxu0 0
        %1393 = vmatprep.subr.bf16.mxu0 0
        %1394 = vmatpush2.bf16.msra.mxu0 0
        %1395 = vmatprep.subr.bf16.mxu0 0
        %1396 = vmatpush2.bf16.msra.mxu0 0
        %1397 = vmatprep.subr.bf16.mxu0 0
        %1398 = vmatpush2.bf16.msra.mxu0 0
        %1399 = vmatprep.subr.bf16.mxu0 0
        %1400 = vmatpush2.bf16.msra.mxu0 0
        %1401 = vmatprep.mubr.bf16.mxu0 0
        %1402 = vmatmul.mubr.bf16.gmra.mxu0 %v1282
        %v1403 = vpop.f32.mrf.mxu0
        %v1404 = vadd.f32 %v1319, %v1403
        %v1405 = vpop.f32.mrf.mxu0
        %v1406 = vpop.f32.mrf.mxu0
        %v1407 = vadd.f32 %v1319, %v1406
        %v1408 = vpop.f32.mrf.mxu0
        %1409 = vmatprep.mubr.bf16.mxu0 0
        %1410 = vmatmul.mubr.bf16.gmra.mxu0 %v1283
        %v1411 = vpop.f32.mrf.mxu0
        %v1412 = vadd.f32 %v1319, %v1411
        %v1413 = vpop.f32.mrf.mxu0
        %v1414 = vpop.f32.mrf.mxu0
        %v1415 = vadd.f32 %v1319, %v1414
        %v1416 = vpop.f32.mrf.mxu0
        %1417 = vmatprep.mubr.bf16.mxu0 0
        %1418 = vmatmul.mubr.bf16.gmra.mxu0 %v1284
        %v1419 = vpop.f32.mrf.mxu0
        %v1420 = vadd.f32 %v1319, %v1419
        %v1421 = vpop.f32.mrf.mxu0
        %v1422 = vpop.f32.mrf.mxu0
        %v1423 = vadd.f32 %v1319, %v1422
        %v1424 = vpop.f32.mrf.mxu0
        %1425 = vmatprep.mubr.bf16.mxu0 0
        %1426 = vmatmul.mubr.bf16.gmra.mxu0 %v1285
        %v1427 = vpop.f32.mrf.mxu0
        %v1428 = vadd.f32 %v1319, %v1427
        %v1429 = vpop.f32.mrf.mxu0
        %v1430 = vpop.f32.mrf.mxu0
        %v1431 = vadd.f32 %v1319, %v1430
        %v1432 = vpop.f32.mrf.mxu0
        %1433 = vmatprep.mubr.bf16.mxu0 0
        %1434 = vmatmul.mubr.bf16.gmra.mxu0 %v1286
        %v1435 = vpop.f32.mrf.mxu0
        %v1436 = vadd.f32 %v1319, %v1435
        %v1437 = vpop.f32.mrf.mxu0
        %v1438 = vpop.f32.mrf.mxu0
        %v1439 = vadd.f32 %v1319, %v1438
        %v1440 = vpop.f32.mrf.mxu0
        %1441 = vmatprep.mubr.bf16.mxu0 0
        %1442 = vmatmul.mubr.bf16.gmra.mxu0 %v1287
        %v1443 = vpop.f32.mrf.mxu0
        %v1444 = vadd.f32 %v1319, %v1443
        %v1445 = vpop.f32.mrf.mxu0
        %v1446 = vpop.f32.mrf.mxu0
        %v1447 = vadd.f32 %v1319, %v1446
        %v1448 = vpop.f32.mrf.mxu0
        %1449 = vmatprep.mubr.bf16.mxu0 0
        %1450 = vmatmul.mubr.bf16.gmra.mxu0 %v1288
        %v1451 = vpop.f32.mrf.mxu0
        %v1452 = vadd.f32 %v1319, %v1451
        %v1453 = vpop.f32.mrf.mxu0
        %v1454 = vpop.f32.mrf.mxu0
        %v1455 = vadd.f32 %v1319, %v1454
        %v1456 = vpop.f32.mrf.mxu0
        %1457 = vmatprep.mubr.bf16.mxu0 0
        %1458 = vmatmul.mubr.bf16.gmra.mxu0 %v1289
        %v1459 = vpop.f32.mrf.mxu0
        %v1460 = vadd.f32 %v1319, %v1459
        %v1461 = vpop.f32.mrf.mxu0
        %v1462 = vpop.f32.mrf.mxu0
        %v1463 = vadd.f32 %v1319, %v1462
        %v1464 = vpop.f32.mrf.mxu0
        %1465 = vmatprep.mubr.bf16.mxu0 0
        %1466 = vmatmul.mubr.bf16.gmra.mxu0 %v1290
        %v1467 = vpop.f32.mrf.mxu0
        %v1468 = vadd.f32 %v1319, %v1467
        %v1469 = vpop.f32.mrf.mxu0
        %v1470 = vpop.f32.mrf.mxu0
        %v1471 = vadd.f32 %v1319, %v1470
        %v1472 = vpop.f32.mrf.mxu0
        %1473 = vmatprep.mubr.bf16.mxu0 0
        %1474 = vmatmul.mubr.bf16.gmra.mxu0 %v1291
        %v1475 = vpop.f32.mrf.mxu0
        %v1476 = vadd.f32 %v1319, %v1475
        %v1477 = vpop.f32.mrf.mxu0
        %v1478 = vpop.f32.mrf.mxu0
        %v1479 = vadd.f32 %v1319, %v1478
        %v1480 = vpop.f32.mrf.mxu0
        %1481 = vmatprep.mubr.bf16.mxu0 0
        %1482 = vmatmul.mubr.bf16.gmra.mxu0 %v1292
        %v1483 = vpop.f32.mrf.mxu0
        %v1484 = vadd.f32 %v1319, %v1483
        %v1485 = vpop.f32.mrf.mxu0
        %v1486 = vpop.f32.mrf.mxu0
        %v1487 = vadd.f32 %v1319, %v1486
        %v1488 = vpop.f32.mrf.mxu0
        %1489 = vmatprep.mubr.bf16.mxu0 0
        %1490 = vmatmul.mubr.bf16.gmra.mxu0 %v1293
        %v1491 = vpop.f32.mrf.mxu0
        %v1492 = vadd.f32 %v1319, %v1491
        %v1493 = vpop.f32.mrf.mxu0
        %v1494 = vpop.f32.mrf.mxu0
        %v1495 = vadd.f32 %v1319, %v1494
        %v1496 = vpop.f32.mrf.mxu0
        %1497 = vmatprep.mubr.bf16.mxu0 0
        %1498 = vmatmul.mubr.bf16.gmra.mxu0 %v1294
        %v1499 = vpop.f32.mrf.mxu0
        %v1500 = vadd.f32 %v1319, %v1499
        %v1501 = vpop.f32.mrf.mxu0
        %v1502 = vpop.f32.mrf.mxu0
        %v1503 = vadd.f32 %v1319, %v1502
        %v1504 = vpop.f32.mrf.mxu0
        %1505 = vmatprep.mubr.bf16.mxu0 0
        %1506 = vmatmul.mubr.bf16.gmra.mxu0 %v1295
        %v1507 = vpop.f32.mrf.mxu0
        %v1508 = vadd.f32 %v1319, %v1507
        %v1509 = vpop.f32.mrf.mxu0
        %v1510 = vpop.f32.mrf.mxu0
        %v1511 = vadd.f32 %v1319, %v1510
        %v1512 = vpop.f32.mrf.mxu0
        %1513 = vmatprep.mubr.bf16.mxu0 0
        %1514 = vmatmul.mubr.bf16.gmra.mxu0 %v1296
        %v1515 = vpop.f32.mrf.mxu0
        %v1516 = vadd.f32 %v1319, %v1515
        %v1517 = vpop.f32.mrf.mxu0
        %v1518 = vpop.f32.mrf.mxu0
        %v1519 = vadd.f32 %v1319, %v1518
        %v1520 = vpop.f32.mrf.mxu0
        %1521 = vmatprep.mubr.bf16.mxu0 0
        %1522 = vmatmul.mubr.bf16.gmra.mxu0 %v1297
        %v1523 = vpop.f32.mrf.mxu0
        %v1524 = vadd.f32 %v1319, %v1523
        %v1525 = vpop.f32.mrf.mxu0
        %v1526 = vpop.f32.mrf.mxu0
        %v1527 = vadd.f32 %v1319, %v1526
        %v1528 = vpop.f32.mrf.mxu0
        %1529 = vdwg.mxu0
        %v1530 = vmax.f32 %v1404, 0.0
        %v1531 = vmax.f32 %v1407, 0.0
        %v1532 = vmax.f32 %v1412, 0.0
        %v1533 = vmax.f32 %v1415, 0.0
        %v1534 = vmax.f32 %v1420, 0.0
        %v1535 = vmax.f32 %v1423, 0.0
        %v1536 = vmax.f32 %v1428, 0.0
        %v1537 = vmax.f32 %v1431, 0.0
        %v1538 = vmax.f32 %v1436, 0.0
        %v1539 = vmax.f32 %v1439, 0.0
        %v1540 = vmax.f32 %v1444, 0.0
        %v1541 = vmax.f32 %v1447, 0.0
        %v1542 = vmax.f32 %v1452, 0.0
        %v1543 = vmax.f32 %v1455, 0.0
        %v1544 = vmax.f32 %v1460, 0.0
        %v1545 = vmax.f32 %v1463, 0.0
        %v1546 = vmax.f32 %v1468, 0.0
        %v1547 = vmax.f32 %v1471, 0.0
        %v1548 = vmax.f32 %v1476, 0.0
        %v1549 = vmax.f32 %v1479, 0.0
        %v1550 = vmax.f32 %v1484, 0.0
        %v1551 = vmax.f32 %v1487, 0.0
        %v1552 = vmax.f32 %v1492, 0.0
        %v1553 = vmax.f32 %v1495, 0.0
        %v1554 = vmax.f32 %v1500, 0.0
        %v1555 = vmax.f32 %v1503, 0.0
        %v1556 = vmax.f32 %v1508, 0.0
        %v1557 = vmax.f32 %v1511, 0.0
        %v1558 = vmax.f32 %v1516, 0.0
        %v1559 = vmax.f32 %v1519, 0.0
        %v1560 = vmax.f32 %v1524, 0.0
        %v1561 = vmax.f32 %v1527, 0.0
        %v1562 = vpack.c.bf16 %v1531, %v1530
        %v1563 = vpack.c.bf16 %v1533, %v1532
        %v1564 = vpack.c.bf16 %v1535, %v1534
        %v1565 = vpack.c.bf16 %v1537, %v1536
        %v1566 = vpack.c.bf16 %v1539, %v1538
        %v1567 = vpack.c.bf16 %v1541, %v1540
        %v1568 = vpack.c.bf16 %v1543, %v1542
        %v1569 = vpack.c.bf16 %v1545, %v1544
        %v1570 = vpack.c.bf16 %v1547, %v1546
        %v1571 = vpack.c.bf16 %v1549, %v1548
        %v1572 = vpack.c.bf16 %v1551, %v1550
        %v1573 = vpack.c.bf16 %v1553, %v1552
        %v1574 = vpack.c.bf16 %v1555, %v1554
        %v1575 = vpack.c.bf16 %v1557, %v1556
        %v1576 = vpack.c.bf16 %v1559, %v1558
        %v1577 = vpack.c.bf16 %v1561, %v1560
        %v1578 = vld [vmem:[#allocation10] sm:$0xf]
        %v1579 = vld [vmem:[#allocation10 + $0x4] sm:$0xf]
        %v1580 = vld [vmem:[#allocation10 + $0x8] sm:$0xf]
        %v1581 = vld [vmem:[#allocation10 + $0xc] sm:$0xf]
        %v1582 = vld [vmem:[#allocation10 + $0x10] sm:$0xf]
        %v1583 = vld [vmem:[#allocation10 + $0x14] sm:$0xf]
        %v1584 = vld [vmem:[#allocation10 + $0x18] sm:$0xf]
        %v1585 = vld [vmem:[#allocation10 + $0x1c] sm:$0xf]
        %v1586 = vld [vmem:[#allocation10 + $0x20] sm:$0xf]
        %v1587 = vld [vmem:[#allocation10 + $0x24] sm:$0xf]
        %v1588 = vld [vmem:[#allocation10 + $0x28] sm:$0xf]
        %v1589 = vld [vmem:[#allocation10 + $0x2c] sm:$0xf]
        %v1590 = vld [vmem:[#allocation10 + $0x30] sm:$0xf]
        %v1591 = vld [vmem:[#allocation10 + $0x34] sm:$0xf]
        %v1592 = vld [vmem:[#allocation10 + $0x38] sm:$0xf]
        %v1593 = vld [vmem:[#allocation10 + $0x3c] sm:$0xf]
        %v1594 = vld [vmem:[%s8] sm:$0x1]
        %v1596 = vlaneseq
        %v1597 = vshrl.u32 %v1596, 7
        %v1598 = vsub.s32 0, %v1597
        %v1599 = vrot.slane %v1594, %v1598
        %v1617 = vunpack.c.l.b16 %v1578
        %v1618 = vunpack.c.l.b16 %v1579
        %v1619 = vunpack.c.l.b16 %v1580
        %v1620 = vunpack.c.l.b16 %v1581
        %v1621 = vunpack.c.l.b16 %v1582
        %v1622 = vunpack.c.l.b16 %v1583
        %v1623 = vunpack.c.l.b16 %v1584
        %v1624 = vunpack.c.l.b16 %v1585
        %v1625 = vunpack.c.l.b16 %v1586
        %v1626 = vunpack.c.l.b16 %v1587
        %v1627 = vunpack.c.l.b16 %v1588
        %v1628 = vunpack.c.l.b16 %v1589
        %v1629 = vunpack.c.l.b16 %v1590
        %v1630 = vunpack.c.l.b16 %v1591
        %v1631 = vunpack.c.l.b16 %v1592
        %v1632 = vunpack.c.l.b16 %v1593
        %v1633 = vpack.c.b16 %v1618, %v1617
        %v1634 = vpack.c.b16 %v1620, %v1619
        %v1635 = vpack.c.b16 %v1622, %v1621
        %v1636 = vpack.c.b16 %v1624, %v1623
        %v1637 = vpack.c.b16 %v1626, %v1625
        %v1638 = vpack.c.b16 %v1628, %v1627
        %v1639 = vpack.c.b16 %v1630, %v1629
        %v1640 = vpack.c.b16 %v1632, %v1631
        %1649 = vmatprep.subr.bf16.mxu0 0
        %1650 = vmatpush1.bf16.msra.mxu0 %v1640
        %1651 = vmatprep.subr.bf16.mxu0 0
        %1652 = vmatpush1.bf16.msra.mxu0 %v1639
        %1653 = vmatprep.subr.bf16.mxu0 0
        %1654 = vmatpush1.bf16.msra.mxu0 %v1638
        %1655 = vmatprep.subr.bf16.mxu0 0
        %1656 = vmatpush1.bf16.msra.mxu0 %v1637
        %1657 = vmatprep.subr.bf16.mxu0 0
        %1658 = vmatpush1.bf16.msra.mxu0 %v1636
        %1659 = vmatprep.subr.bf16.mxu0 0
        %1660 = vmatpush1.bf16.msra.mxu0 %v1635
        %1661 = vmatprep.subr.bf16.mxu0 0
        %1662 = vmatpush1.bf16.msra.mxu0 %v1634
        %1663 = vmatprep.subr.bf16.mxu0 0
        %1664 = vmatpush1.bf16.msra.mxu0 %v1633
        %1665 = vmatprep.subr.bf16.mxu0 0
        %1666 = vmatpush2.bf16.msra.mxu0 0
        %1667 = vmatprep.subr.bf16.mxu0 0
        %1668 = vmatpush2.bf16.msra.mxu0 0
        %1669 = vmatprep.subr.bf16.mxu0 0
        %1670 = vmatpush2.bf16.msra.mxu0 0
        %1671 = vmatprep.subr.bf16.mxu0 0
        %1672 = vmatpush2.bf16.msra.mxu0 0
        %1673 = vmatprep.subr.bf16.mxu0 0
        %1674 = vmatpush2.bf16.msra.mxu0 0
        %1675 = vmatprep.subr.bf16.mxu0 0
        %1676 = vmatpush2.bf16.msra.mxu0 0
        %1677 = vmatprep.subr.bf16.mxu0 0
        %1678 = vmatpush2.bf16.msra.mxu0 0
        %1679 = vmatprep.subr.bf16.mxu0 0
        %1680 = vmatpush2.bf16.msra.mxu0 0
        %1681 = vmatprep.mubr.bf16.mxu0 0
        %1682 = vmatmul.mubr.bf16.gmra.mxu0 %v1562
        %v1683 = vpop.f32.mrf.mxu0
        %v1684 = vadd.f32 %v1599, %v1683
        %v1685 = vpop.f32.mrf.mxu0
        %v1686 = vpop.f32.mrf.mxu0
        %v1687 = vadd.f32 %v1599, %v1686
        %v1688 = vpop.f32.mrf.mxu0
        %1689 = vmatprep.mubr.bf16.mxu0 0
        %1690 = vmatmul.mubr.bf16.gmra.mxu0 %v1563
        %v1691 = vpop.f32.mrf.mxu0
        %v1692 = vadd.f32 %v1599, %v1691
        %v1693 = vpop.f32.mrf.mxu0
        %v1694 = vpop.f32.mrf.mxu0
        %v1695 = vadd.f32 %v1599, %v1694
        %v1696 = vpop.f32.mrf.mxu0
        %1697 = vmatprep.mubr.bf16.mxu0 0
        %1698 = vmatmul.mubr.bf16.gmra.mxu0 %v1564
        %v1699 = vpop.f32.mrf.mxu0
        %v1700 = vadd.f32 %v1599, %v1699
        %v1701 = vpop.f32.mrf.mxu0
        %v1702 = vpop.f32.mrf.mxu0
        %v1703 = vadd.f32 %v1599, %v1702
        %v1704 = vpop.f32.mrf.mxu0
        %1705 = vmatprep.mubr.bf16.mxu0 0
        %1706 = vmatmul.mubr.bf16.gmra.mxu0 %v1565
        %v1707 = vpop.f32.mrf.mxu0
        %v1708 = vadd.f32 %v1599, %v1707
        %v1709 = vpop.f32.mrf.mxu0
        %v1710 = vpop.f32.mrf.mxu0
        %v1711 = vadd.f32 %v1599, %v1710
        %v1712 = vpop.f32.mrf.mxu0
        %1713 = vmatprep.mubr.bf16.mxu0 0
        %1714 = vmatmul.mubr.bf16.gmra.mxu0 %v1566
        %v1715 = vpop.f32.mrf.mxu0
        %v1716 = vadd.f32 %v1599, %v1715
        %v1717 = vpop.f32.mrf.mxu0
        %v1718 = vpop.f32.mrf.mxu0
        %v1719 = vadd.f32 %v1599, %v1718
        %v1720 = vpop.f32.mrf.mxu0
        %1721 = vmatprep.mubr.bf16.mxu0 0
        %1722 = vmatmul.mubr.bf16.gmra.mxu0 %v1567
        %v1723 = vpop.f32.mrf.mxu0
        %v1724 = vadd.f32 %v1599, %v1723
        %v1725 = vpop.f32.mrf.mxu0
        %v1726 = vpop.f32.mrf.mxu0
        %v1727 = vadd.f32 %v1599, %v1726
        %v1728 = vpop.f32.mrf.mxu0
        %1729 = vmatprep.mubr.bf16.mxu0 0
        %1730 = vmatmul.mubr.bf16.gmra.mxu0 %v1568
        %v1731 = vpop.f32.mrf.mxu0
        %v1732 = vadd.f32 %v1599, %v1731
        %v1733 = vpop.f32.mrf.mxu0
        %v1734 = vpop.f32.mrf.mxu0
        %v1735 = vadd.f32 %v1599, %v1734
        %v1736 = vpop.f32.mrf.mxu0
        %1737 = vmatprep.mubr.bf16.mxu0 0
        %1738 = vmatmul.mubr.bf16.gmra.mxu0 %v1569
        %v1739 = vpop.f32.mrf.mxu0
        %v1740 = vadd.f32 %v1599, %v1739
        %v1741 = vpop.f32.mrf.mxu0
        %v1742 = vpop.f32.mrf.mxu0
        %v1743 = vadd.f32 %v1599, %v1742
        %v1744 = vpop.f32.mrf.mxu0
        %1745 = vmatprep.mubr.bf16.mxu0 0
        %1746 = vmatmul.mubr.bf16.gmra.mxu0 %v1570
        %v1747 = vpop.f32.mrf.mxu0
        %v1748 = vadd.f32 %v1599, %v1747
        %v1749 = vpop.f32.mrf.mxu0
        %v1750 = vpop.f32.mrf.mxu0
        %v1751 = vadd.f32 %v1599, %v1750
        %v1752 = vpop.f32.mrf.mxu0
        %1753 = vmatprep.mubr.bf16.mxu0 0
        %1754 = vmatmul.mubr.bf16.gmra.mxu0 %v1571
        %v1755 = vpop.f32.mrf.mxu0
        %v1756 = vadd.f32 %v1599, %v1755
        %v1757 = vpop.f32.mrf.mxu0
        %v1758 = vpop.f32.mrf.mxu0
        %v1759 = vadd.f32 %v1599, %v1758
        %v1760 = vpop.f32.mrf.mxu0
        %1761 = vmatprep.mubr.bf16.mxu0 0
        %1762 = vmatmul.mubr.bf16.gmra.mxu0 %v1572
        %v1763 = vpop.f32.mrf.mxu0
        %v1764 = vadd.f32 %v1599, %v1763
        %v1765 = vpop.f32.mrf.mxu0
        %v1766 = vpop.f32.mrf.mxu0
        %v1767 = vadd.f32 %v1599, %v1766
        %v1768 = vpop.f32.mrf.mxu0
        %1769 = vmatprep.mubr.bf16.mxu0 0
        %1770 = vmatmul.mubr.bf16.gmra.mxu0 %v1573
        %v1771 = vpop.f32.mrf.mxu0
        %v1772 = vadd.f32 %v1599, %v1771
        %v1773 = vpop.f32.mrf.mxu0
        %v1774 = vpop.f32.mrf.mxu0
        %v1775 = vadd.f32 %v1599, %v1774
        %v1776 = vpop.f32.mrf.mxu0
        %1777 = vmatprep.mubr.bf16.mxu0 0
        %1778 = vmatmul.mubr.bf16.gmra.mxu0 %v1574
        %v1779 = vpop.f32.mrf.mxu0
        %v1780 = vadd.f32 %v1599, %v1779
        %v1781 = vpop.f32.mrf.mxu0
        %v1782 = vpop.f32.mrf.mxu0
        %v1783 = vadd.f32 %v1599, %v1782
        %v1784 = vpop.f32.mrf.mxu0
        %1785 = vmatprep.mubr.bf16.mxu0 0
        %1786 = vmatmul.mubr.bf16.gmra.mxu0 %v1575
        %v1787 = vpop.f32.mrf.mxu0
        %v1788 = vadd.f32 %v1599, %v1787
        %v1789 = vpop.f32.mrf.mxu0
        %v1790 = vpop.f32.mrf.mxu0
        %v1791 = vadd.f32 %v1599, %v1790
        %v1792 = vpop.f32.mrf.mxu0
        %1793 = vmatprep.mubr.bf16.mxu0 0
        %1794 = vmatmul.mubr.bf16.gmra.mxu0 %v1576
        %v1795 = vpop.f32.mrf.mxu0
        %v1796 = vadd.f32 %v1599, %v1795
        %v1797 = vpop.f32.mrf.mxu0
        %v1798 = vpop.f32.mrf.mxu0
        %v1799 = vadd.f32 %v1599, %v1798
        %v1800 = vpop.f32.mrf.mxu0
        %1801 = vmatprep.mubr.bf16.mxu0 0
        %1802 = vmatmul.mubr.bf16.gmra.mxu0 %v1577
        %v1803 = vpop.f32.mrf.mxu0
        %v1804 = vadd.f32 %v1599, %v1803
        %v1805 = vpop.f32.mrf.mxu0
        %v1806 = vpop.f32.mrf.mxu0
        %v1807 = vadd.f32 %v1599, %v1806
        %v1808 = vpop.f32.mrf.mxu0
        %1809 = vdwg.mxu0
        %v1810 = vmax.f32 %v1684, 0.0
        %v1811 = vmax.f32 %v1687, 0.0
        %v1812 = vmax.f32 %v1692, 0.0
        %v1813 = vmax.f32 %v1695, 0.0
        %v1814 = vmax.f32 %v1700, 0.0
        %v1815 = vmax.f32 %v1703, 0.0
        %v1816 = vmax.f32 %v1708, 0.0
        %v1817 = vmax.f32 %v1711, 0.0
        %v1818 = vmax.f32 %v1716, 0.0
        %v1819 = vmax.f32 %v1719, 0.0
        %v1820 = vmax.f32 %v1724, 0.0
        %v1821 = vmax.f32 %v1727, 0.0
        %v1822 = vmax.f32 %v1732, 0.0
        %v1823 = vmax.f32 %v1735, 0.0
        %v1824 = vmax.f32 %v1740, 0.0
        %v1825 = vmax.f32 %v1743, 0.0
        %v1826 = vmax.f32 %v1748, 0.0
        %v1827 = vmax.f32 %v1751, 0.0
        %v1828 = vmax.f32 %v1756, 0.0
        %v1829 = vmax.f32 %v1759, 0.0
        %v1830 = vmax.f32 %v1764, 0.0
        %v1831 = vmax.f32 %v1767, 0.0
        %v1832 = vmax.f32 %v1772, 0.0
        %v1833 = vmax.f32 %v1775, 0.0
        %v1834 = vmax.f32 %v1780, 0.0
        %v1835 = vmax.f32 %v1783, 0.0
        %v1836 = vmax.f32 %v1788, 0.0
        %v1837 = vmax.f32 %v1791, 0.0
        %v1838 = vmax.f32 %v1796, 0.0
        %v1839 = vmax.f32 %v1799, 0.0
        %v1840 = vmax.f32 %v1804, 0.0
        %v1841 = vmax.f32 %v1807, 0.0
        %v1842 = vpack.c.bf16 %v1811, %v1810
        %v1843 = vpack.c.bf16 %v1813, %v1812
        %v1844 = vpack.c.bf16 %v1815, %v1814
        %v1845 = vpack.c.bf16 %v1817, %v1816
        %v1846 = vpack.c.bf16 %v1819, %v1818
        %v1847 = vpack.c.bf16 %v1821, %v1820
        %v1848 = vpack.c.bf16 %v1823, %v1822
        %v1849 = vpack.c.bf16 %v1825, %v1824
        %v1850 = vpack.c.bf16 %v1827, %v1826
        %v1851 = vpack.c.bf16 %v1829, %v1828
        %v1852 = vpack.c.bf16 %v1831, %v1830
        %v1853 = vpack.c.bf16 %v1833, %v1832
        %v1854 = vpack.c.bf16 %v1835, %v1834
        %v1855 = vpack.c.bf16 %v1837, %v1836
        %v1856 = vpack.c.bf16 %v1839, %v1838
        %v1857 = vpack.c.bf16 %v1841, %v1840
        %v1858 = vld [vmem:[#allocation11] sm:$0xf]
        %v1859 = vld [vmem:[#allocation11 + $0x4] sm:$0xf]
        %v1860 = vld [vmem:[#allocation11 + $0x8] sm:$0xf]
        %v1861 = vld [vmem:[#allocation11 + $0xc] sm:$0xf]
        %v1862 = vld [vmem:[#allocation11 + $0x10] sm:$0xf]
        %v1863 = vld [vmem:[#allocation11 + $0x14] sm:$0xf]
        %v1864 = vld [vmem:[#allocation11 + $0x18] sm:$0xf]
        %v1865 = vld [vmem:[#allocation11 + $0x1c] sm:$0xf]
        %v1866 = vld [vmem:[#allocation11 + $0x20] sm:$0xf]
        %v1867 = vld [vmem:[#allocation11 + $0x24] sm:$0xf]
        %v1868 = vld [vmem:[#allocation11 + $0x28] sm:$0xf]
        %v1869 = vld [vmem:[#allocation11 + $0x2c] sm:$0xf]
        %v1870 = vld [vmem:[#allocation11 + $0x30] sm:$0xf]
        %v1871 = vld [vmem:[#allocation11 + $0x34] sm:$0xf]
        %v1872 = vld [vmem:[#allocation11 + $0x38] sm:$0xf]
        %v1873 = vld [vmem:[#allocation11 + $0x3c] sm:$0xf]
        %v1874 = vld [vmem:[%s10] sm:$0x1]
        %v1876 = vlaneseq
        %v1877 = vshrl.u32 %v1876, 7
        %v1878 = vsub.s32 0, %v1877
        %v1879 = vrot.slane %v1874, %v1878
        %v1897 = vunpack.c.l.b16 %v1858
        %v1898 = vunpack.c.l.b16 %v1859
        %v1899 = vunpack.c.l.b16 %v1860
        %v1900 = vunpack.c.l.b16 %v1861
        %v1901 = vunpack.c.l.b16 %v1862
        %v1902 = vunpack.c.l.b16 %v1863
        %v1903 = vunpack.c.l.b16 %v1864
        %v1904 = vunpack.c.l.b16 %v1865
        %v1905 = vunpack.c.l.b16 %v1866
        %v1906 = vunpack.c.l.b16 %v1867
        %v1907 = vunpack.c.l.b16 %v1868
        %v1908 = vunpack.c.l.b16 %v1869
        %v1909 = vunpack.c.l.b16 %v1870
        %v1910 = vunpack.c.l.b16 %v1871
        %v1911 = vunpack.c.l.b16 %v1872
        %v1912 = vunpack.c.l.b16 %v1873
        %v1913 = vpack.c.b16 %v1898, %v1897
        %v1914 = vpack.c.b16 %v1900, %v1899
        %v1915 = vpack.c.b16 %v1902, %v1901
        %v1916 = vpack.c.b16 %v1904, %v1903
        %v1917 = vpack.c.b16 %v1906, %v1905
        %v1918 = vpack.c.b16 %v1908, %v1907
        %v1919 = vpack.c.b16 %v1910, %v1909
        %v1920 = vpack.c.b16 %v1912, %v1911
        %1929 = vmatprep.subr.bf16.mxu0 0
        %1930 = vmatpush1.bf16.msra.mxu0 %v1920
        %1931 = vmatprep.subr.bf16.mxu0 0
        %1932 = vmatpush1.bf16.msra.mxu0 %v1919
        %1933 = vmatprep.subr.bf16.mxu0 0
        %1934 = vmatpush1.bf16.msra.mxu0 %v1918
        %1935 = vmatprep.subr.bf16.mxu0 0
        %1936 = vmatpush1.bf16.msra.mxu0 %v1917
        %1937 = vmatprep.subr.bf16.mxu0 0
        %1938 = vmatpush1.bf16.msra.mxu0 %v1916
        %1939 = vmatprep.subr.bf16.mxu0 0
        %1940 = vmatpush1.bf16.msra.mxu0 %v1915
        %1941 = vmatprep.subr.bf16.mxu0 0
        %1942 = vmatpush1.bf16.msra.mxu0 %v1914
        %1943 = vmatprep.subr.bf16.mxu0 0
        %1944 = vmatpush1.bf16.msra.mxu0 %v1913
        %1945 = vmatprep.subr.bf16.mxu0 0
        %1946 = vmatpush2.bf16.msra.mxu0 0
        %1947 = vmatprep.subr.bf16.mxu0 0
        %1948 = vmatpush2.bf16.msra.mxu0 0
        %1949 = vmatprep.subr.bf16.mxu0 0
        %1950 = vmatpush2.bf16.msra.mxu0 0
        %1951 = vmatprep.subr.bf16.mxu0 0
        %1952 = vmatpush2.bf16.msra.mxu0 0
        %1953 = vmatprep.subr.bf16.mxu0 0
        %1954 = vmatpush2.bf16.msra.mxu0 0
        %1955 = vmatprep.subr.bf16.mxu0 0
        %1956 = vmatpush2.bf16.msra.mxu0 0
        %1957 = vmatprep.subr.bf16.mxu0 0
        %1958 = vmatpush2.bf16.msra.mxu0 0
        %1959 = vmatprep.subr.bf16.mxu0 0
        %1960 = vmatpush2.bf16.msra.mxu0 0
        %1961 = vmatprep.mubr.bf16.mxu0 0
        %1962 = vmatmul.mubr.bf16.gmra.mxu0 %v1842
        %v1963 = vpop.f32.mrf.mxu0
        %v1964 = vadd.f32 %v1879, %v1963
        %v1965 = vpop.f32.mrf.mxu0
        %v1966 = vpop.f32.mrf.mxu0
        %v1967 = vadd.f32 %v1879, %v1966
        %v1968 = vpop.f32.mrf.mxu0
        %1969 = vmatprep.mubr.bf16.mxu0 0
        %1970 = vmatmul.mubr.bf16.gmra.mxu0 %v1843
        %v1971 = vpop.f32.mrf.mxu0
        %v1972 = vadd.f32 %v1879, %v1971
        %v1973 = vpop.f32.mrf.mxu0
        %v1974 = vpop.f32.mrf.mxu0
        %v1975 = vadd.f32 %v1879, %v1974
        %v1976 = vpop.f32.mrf.mxu0
        %1977 = vmatprep.mubr.bf16.mxu0 0
        %1978 = vmatmul.mubr.bf16.gmra.mxu0 %v1844
        %v1979 = vpop.f32.mrf.mxu0
        %v1980 = vadd.f32 %v1879, %v1979
        %v1981 = vpop.f32.mrf.mxu0
        %v1982 = vpop.f32.mrf.mxu0
        %v1983 = vadd.f32 %v1879, %v1982
        %v1984 = vpop.f32.mrf.mxu0
        %1985 = vmatprep.mubr.bf16.mxu0 0
        %1986 = vmatmul.mubr.bf16.gmra.mxu0 %v1845
        %v1987 = vpop.f32.mrf.mxu0
        %v1988 = vadd.f32 %v1879, %v1987
        %v1989 = vpop.f32.mrf.mxu0
        %v1990 = vpop.f32.mrf.mxu0
        %v1991 = vadd.f32 %v1879, %v1990
        %v1992 = vpop.f32.mrf.mxu0
        %1993 = vmatprep.mubr.bf16.mxu0 0
        %1994 = vmatmul.mubr.bf16.gmra.mxu0 %v1846
        %v1995 = vpop.f32.mrf.mxu0
        %v1996 = vadd.f32 %v1879, %v1995
        %v1997 = vpop.f32.mrf.mxu0
        %v1998 = vpop.f32.mrf.mxu0
        %v1999 = vadd.f32 %v1879, %v1998
        %v2000 = vpop.f32.mrf.mxu0
        %2001 = vmatprep.mubr.bf16.mxu0 0
        %2002 = vmatmul.mubr.bf16.gmra.mxu0 %v1847
        %v2003 = vpop.f32.mrf.mxu0
        %v2004 = vadd.f32 %v1879, %v2003
        %v2005 = vpop.f32.mrf.mxu0
        %v2006 = vpop.f32.mrf.mxu0
        %v2007 = vadd.f32 %v1879, %v2006
        %v2008 = vpop.f32.mrf.mxu0
        %2009 = vmatprep.mubr.bf16.mxu0 0
        %2010 = vmatmul.mubr.bf16.gmra.mxu0 %v1848
        %v2011 = vpop.f32.mrf.mxu0
        %v2012 = vadd.f32 %v1879, %v2011
        %v2013 = vpop.f32.mrf.mxu0
        %v2014 = vpop.f32.mrf.mxu0
        %v2015 = vadd.f32 %v1879, %v2014
        %v2016 = vpop.f32.mrf.mxu0
        %2017 = vmatprep.mubr.bf16.mxu0 0
        %2018 = vmatmul.mubr.bf16.gmra.mxu0 %v1849
        %v2019 = vpop.f32.mrf.mxu0
        %v2020 = vadd.f32 %v1879, %v2019
        %v2021 = vpop.f32.mrf.mxu0
        %v2022 = vpop.f32.mrf.mxu0
        %v2023 = vadd.f32 %v1879, %v2022
        %v2024 = vpop.f32.mrf.mxu0
        %2025 = vmatprep.mubr.bf16.mxu0 0
        %2026 = vmatmul.mubr.bf16.gmra.mxu0 %v1850
        %v2027 = vpop.f32.mrf.mxu0
        %v2028 = vadd.f32 %v1879, %v2027
        %v2029 = vpop.f32.mrf.mxu0
        %v2030 = vpop.f32.mrf.mxu0
        %v2031 = vadd.f32 %v1879, %v2030
        %v2032 = vpop.f32.mrf.mxu0
        %2033 = vmatprep.mubr.bf16.mxu0 0
        %2034 = vmatmul.mubr.bf16.gmra.mxu0 %v1851
        %v2035 = vpop.f32.mrf.mxu0
        %v2036 = vadd.f32 %v1879, %v2035
        %v2037 = vpop.f32.mrf.mxu0
        %v2038 = vpop.f32.mrf.mxu0
        %v2039 = vadd.f32 %v1879, %v2038
        %v2040 = vpop.f32.mrf.mxu0
        %2041 = vmatprep.mubr.bf16.mxu0 0
        %2042 = vmatmul.mubr.bf16.gmra.mxu0 %v1852
        %v2043 = vpop.f32.mrf.mxu0
        %v2044 = vadd.f32 %v1879, %v2043
        %v2045 = vpop.f32.mrf.mxu0
        %v2046 = vpop.f32.mrf.mxu0
        %v2047 = vadd.f32 %v1879, %v2046
        %v2048 = vpop.f32.mrf.mxu0
        %2049 = vmatprep.mubr.bf16.mxu0 0
        %2050 = vmatmul.mubr.bf16.gmra.mxu0 %v1853
        %v2051 = vpop.f32.mrf.mxu0
        %v2052 = vadd.f32 %v1879, %v2051
        %v2053 = vpop.f32.mrf.mxu0
        %v2054 = vpop.f32.mrf.mxu0
        %v2055 = vadd.f32 %v1879, %v2054
        %v2056 = vpop.f32.mrf.mxu0
        %2057 = vmatprep.mubr.bf16.mxu0 0
        %2058 = vmatmul.mubr.bf16.gmra.mxu0 %v1854
        %v2059 = vpop.f32.mrf.mxu0
        %v2060 = vadd.f32 %v1879, %v2059
        %v2061 = vpop.f32.mrf.mxu0
        %v2062 = vpop.f32.mrf.mxu0
        %v2063 = vadd.f32 %v1879, %v2062
        %v2064 = vpop.f32.mrf.mxu0
        %2065 = vmatprep.mubr.bf16.mxu0 0
        %2066 = vmatmul.mubr.bf16.gmra.mxu0 %v1855
        %v2067 = vpop.f32.mrf.mxu0
        %v2068 = vadd.f32 %v1879, %v2067
        %v2069 = vpop.f32.mrf.mxu0
        %v2070 = vpop.f32.mrf.mxu0
        %v2071 = vadd.f32 %v1879, %v2070
        %v2072 = vpop.f32.mrf.mxu0
        %2073 = vmatprep.mubr.bf16.mxu0 0
        %2074 = vmatmul.mubr.bf16.gmra.mxu0 %v1856
        %v2075 = vpop.f32.mrf.mxu0
        %v2076 = vadd.f32 %v1879, %v2075
        %v2077 = vpop.f32.mrf.mxu0
        %v2078 = vpop.f32.mrf.mxu0
        %v2079 = vadd.f32 %v1879, %v2078
        %v2080 = vpop.f32.mrf.mxu0
        %2081 = vmatprep.mubr.bf16.mxu0 0
        %2082 = vmatmul.mubr.bf16.gmra.mxu0 %v1857
        %v2083 = vpop.f32.mrf.mxu0
        %v2084 = vadd.f32 %v1879, %v2083
        %v2085 = vpop.f32.mrf.mxu0
        %v2086 = vpop.f32.mrf.mxu0
        %v2087 = vadd.f32 %v1879, %v2086
        %v2088 = vpop.f32.mrf.mxu0
        %2089 = vdwg.mxu0
        %v2090 = vxor.u32 %v1964, 2147483648
        %v2091 = vxor.u32 %v1967, 2147483648
        %v2092 = vxor.u32 %v1972, 2147483648
        %v2093 = vxor.u32 %v1975, 2147483648
        %v2094 = vxor.u32 %v1980, 2147483648
        %v2095 = vxor.u32 %v1983, 2147483648
        %v2096 = vxor.u32 %v1988, 2147483648
        %v2097 = vxor.u32 %v1991, 2147483648
        %v2098 = vxor.u32 %v1996, 2147483648
        %v2099 = vxor.u32 %v1999, 2147483648
        %v2100 = vxor.u32 %v2004, 2147483648
        %v2101 = vxor.u32 %v2007, 2147483648
        %v2102 = vxor.u32 %v2012, 2147483648
        %v2103 = vxor.u32 %v2015, 2147483648
        %v2104 = vxor.u32 %v2020, 2147483648
        %v2105 = vxor.u32 %v2023, 2147483648
        %v2106 = vxor.u32 %v2028, 2147483648
        %v2107 = vxor.u32 %v2031, 2147483648
        %v2108 = vxor.u32 %v2036, 2147483648
        %v2109 = vxor.u32 %v2039, 2147483648
        %v2110 = vxor.u32 %v2044, 2147483648
        %v2111 = vxor.u32 %v2047, 2147483648
        %v2112 = vxor.u32 %v2052, 2147483648
        %v2113 = vxor.u32 %v2055, 2147483648
        %v2114 = vxor.u32 %v2060, 2147483648
        %v2115 = vxor.u32 %v2063, 2147483648
        %v2116 = vxor.u32 %v2068, 2147483648
        %v2117 = vxor.u32 %v2071, 2147483648
        %v2118 = vxor.u32 %v2076, 2147483648
        %v2119 = vxor.u32 %v2079, 2147483648
        %v2120 = vxor.u32 %v2084, 2147483648
        %v2121 = vxor.u32 %v2087, 2147483648
        %v2122 = vmul.f32 %v2090, 1.442695
        %v2123 = vpow.pop %v2122
        %v2124 = vmul.f32 %v2091, 1.442695
        %v2125 = vpow.pop %v2124
        %v2126 = vmul.f32 %v2092, 1.442695
        %v2127 = vpow.pop %v2126
        %v2128 = vmul.f32 %v2093, 1.442695
        %v2129 = vpow.pop %v2128
        %v2130 = vmul.f32 %v2094, 1.442695
        %v2131 = vpow.pop %v2130
        %v2132 = vmul.f32 %v2095, 1.442695
        %v2133 = vpow.pop %v2132
        %v2134 = vmul.f32 %v2096, 1.442695
        %v2135 = vpow.pop %v2134
        %v2136 = vmul.f32 %v2097, 1.442695
        %v2137 = vpow.pop %v2136
        %v2138 = vmul.f32 %v2098, 1.442695
        %v2139 = vpow.pop %v2138
        %v2140 = vmul.f32 %v2099, 1.442695
        %v2141 = vpow.pop %v2140
        %v2142 = vmul.f32 %v2100, 1.442695
        %v2143 = vpow.pop %v2142
        %v2144 = vmul.f32 %v2101, 1.442695
        %v2145 = vpow.pop %v2144
        %v2146 = vmul.f32 %v2102, 1.442695
        %v2147 = vpow.pop %v2146
        %v2148 = vmul.f32 %v2103, 1.442695
        %v2149 = vpow.pop %v2148
        %v2150 = vmul.f32 %v2104, 1.442695
        %v2151 = vpow.pop %v2150
        %v2152 = vmul.f32 %v2105, 1.442695
        %v2153 = vpow.pop %v2152
        %v2154 = vmul.f32 %v2106, 1.442695
        %v2155 = vpow.pop %v2154
        %v2156 = vmul.f32 %v2107, 1.442695
        %v2157 = vpow.pop %v2156
        %v2158 = vmul.f32 %v2108, 1.442695
        %v2159 = vpow.pop %v2158
        %v2160 = vmul.f32 %v2109, 1.442695
        %v2161 = vpow.pop %v2160
        %v2162 = vmul.f32 %v2110, 1.442695
        %v2163 = vpow.pop %v2162
        %v2164 = vmul.f32 %v2111, 1.442695
        %v2165 = vpow.pop %v2164
        %v2166 = vmul.f32 %v2112, 1.442695
        %v2167 = vpow.pop %v2166
        %v2168 = vmul.f32 %v2113, 1.442695
        %v2169 = vpow.pop %v2168
        %v2170 = vmul.f32 %v2114, 1.442695
        %v2171 = vpow.pop %v2170
        %v2172 = vmul.f32 %v2115, 1.442695
        %v2173 = vpow.pop %v2172
        %v2174 = vmul.f32 %v2116, 1.442695
        %v2175 = vpow.pop %v2174
        %v2176 = vmul.f32 %v2117, 1.442695
        %v2177 = vpow.pop %v2176
        %v2178 = vmul.f32 %v2118, 1.442695
        %v2179 = vpow.pop %v2178
        %v2180 = vmul.f32 %v2119, 1.442695
        %v2181 = vpow.pop %v2180
        %v2182 = vmul.f32 %v2120, 1.442695
        %v2183 = vpow.pop %v2182
        %v2184 = vmul.f32 %v2121, 1.442695
        %v2185 = vpow.pop %v2184
        %v2186 = vadd.f32 %v2123, 1.0
        %v2187 = vadd.f32 %v2125, 1.0
        %v2188 = vadd.f32 %v2127, 1.0
        %v2189 = vadd.f32 %v2129, 1.0
        %v2190 = vadd.f32 %v2131, 1.0
        %v2191 = vadd.f32 %v2133, 1.0
        %v2192 = vadd.f32 %v2135, 1.0
        %v2193 = vadd.f32 %v2137, 1.0
        %v2194 = vadd.f32 %v2139, 1.0
        %v2195 = vadd.f32 %v2141, 1.0
        %v2196 = vadd.f32 %v2143, 1.0
        %v2197 = vadd.f32 %v2145, 1.0
        %v2198 = vadd.f32 %v2147, 1.0
        %v2199 = vadd.f32 %v2149, 1.0
        %v2200 = vadd.f32 %v2151, 1.0
        %v2201 = vadd.f32 %v2153, 1.0
        %v2202 = vadd.f32 %v2155, 1.0
        %v2203 = vadd.f32 %v2157, 1.0
        %v2204 = vadd.f32 %v2159, 1.0
        %v2205 = vadd.f32 %v2161, 1.0
        %v2206 = vadd.f32 %v2163, 1.0
        %v2207 = vadd.f32 %v2165, 1.0
        %v2208 = vadd.f32 %v2167, 1.0
        %v2209 = vadd.f32 %v2169, 1.0
        %v2210 = vadd.f32 %v2171, 1.0
        %v2211 = vadd.f32 %v2173, 1.0
        %v2212 = vadd.f32 %v2175, 1.0
        %v2213 = vadd.f32 %v2177, 1.0
        %v2214 = vadd.f32 %v2179, 1.0
        %v2215 = vadd.f32 %v2181, 1.0
        %v2216 = vadd.f32 %v2183, 1.0
        %v2217 = vadd.f32 %v2185, 1.0
        %v2218 = vrcp.pop %v2186
        %v2219 = vmul.f32 1.0, %v2218
        %v2220 = vrcp.pop %v2187
        %v2221 = vmul.f32 1.0, %v2220
        %v2222 = vrcp.pop %v2188
        %v2223 = vmul.f32 1.0, %v2222
        %v2224 = vrcp.pop %v2189
        %v2225 = vmul.f32 1.0, %v2224
        %v2226 = vrcp.pop %v2190
        %v2227 = vmul.f32 1.0, %v2226
        %v2228 = vrcp.pop %v2191
        %v2229 = vmul.f32 1.0, %v2228
        %v2230 = vrcp.pop %v2192
        %v2231 = vmul.f32 1.0, %v2230
        %v2232 = vrcp.pop %v2193
        %v2233 = vmul.f32 1.0, %v2232
        %v2234 = vrcp.pop %v2194
        %v2235 = vmul.f32 1.0, %v2234
        %v2236 = vrcp.pop %v2195
        %v2237 = vmul.f32 1.0, %v2236
        %v2238 = vrcp.pop %v2196
        %v2239 = vmul.f32 1.0, %v2238
        %v2240 = vrcp.pop %v2197
        %v2241 = vmul.f32 1.0, %v2240
        %v2242 = vrcp.pop %v2198
        %v2243 = vmul.f32 1.0, %v2242
        %v2244 = vrcp.pop %v2199
        %v2245 = vmul.f32 1.0, %v2244
        %v2246 = vrcp.pop %v2200
        %v2247 = vmul.f32 1.0, %v2246
        %v2248 = vrcp.pop %v2201
        %v2249 = vmul.f32 1.0, %v2248
        %v2250 = vrcp.pop %v2202
        %v2251 = vmul.f32 1.0, %v2250
        %v2252 = vrcp.pop %v2203
        %v2253 = vmul.f32 1.0, %v2252
        %v2254 = vrcp.pop %v2204
        %v2255 = vmul.f32 1.0, %v2254
        %v2256 = vrcp.pop %v2205
        %v2257 = vmul.f32 1.0, %v2256
        %v2258 = vrcp.pop %v2206
        %v2259 = vmul.f32 1.0, %v2258
        %v2260 = vrcp.pop %v2207
        %v2261 = vmul.f32 1.0, %v2260
        %v2262 = vrcp.pop %v2208
        %v2263 = vmul.f32 1.0, %v2262
        %v2264 = vrcp.pop %v2209
        %v2265 = vmul.f32 1.0, %v2264
        %v2266 = vrcp.pop %v2210
        %v2267 = vmul.f32 1.0, %v2266
        %v2268 = vrcp.pop %v2211
        %v2269 = vmul.f32 1.0, %v2268
        %v2270 = vrcp.pop %v2212
        %v2271 = vmul.f32 1.0, %v2270
        %v2272 = vrcp.pop %v2213
        %v2273 = vmul.f32 1.0, %v2272
        %v2274 = vrcp.pop %v2214
        %v2275 = vmul.f32 1.0, %v2274
        %v2276 = vrcp.pop %v2215
        %v2277 = vmul.f32 1.0, %v2276
        %v2278 = vrcp.pop %v2216
        %v2279 = vmul.f32 1.0, %v2278
        %v2280 = vrcp.pop %v2217
        %v2281 = vmul.f32 1.0, %v2280
        %2282 = vst [vmem:[%s478] sm:$0xff] %v2219
        %2283 = vst [vmem:[%s478 + $0x8] sm:$0xff] %v2221
        %2284 = vst [vmem:[%s478 + $0x10] sm:$0xff] %v2223
        %2285 = vst [vmem:[%s478 + $0x18] sm:$0xff] %v2225
        %2286 = vst [vmem:[%s478 + $0x20] sm:$0xff] %v2227
        %2287 = vst [vmem:[%s478 + $0x28] sm:$0xff] %v2229
        %2288 = vst [vmem:[%s478 + $0x30] sm:$0xff] %v2231
        %2289 = vst [vmem:[%s478 + $0x38] sm:$0xff] %v2233
        %2290 = vst [vmem:[%s478 + $0x40] sm:$0xff] %v2235
        %2291 = vst [vmem:[%s478 + $0x48] sm:$0xff] %v2237
        %2292 = vst [vmem:[%s478 + $0x50] sm:$0xff] %v2239
        %2293 = vst [vmem:[%s478 + $0x58] sm:$0xff] %v2241
        %2294 = vst [vmem:[%s478 + $0x60] sm:$0xff] %v2243
        %2295 = vst [vmem:[%s478 + $0x68] sm:$0xff] %v2245
        %2296 = vst [vmem:[%s478 + $0x70] sm:$0xff] %v2247
        %2297 = vst [vmem:[%s478 + $0x78] sm:$0xff] %v2249
        %2298 = vst [vmem:[%s478 + $0x80] sm:$0xff] %v2251
        %2299 = vst [vmem:[%s478 + $0x88] sm:$0xff] %v2253
        %2300 = vst [vmem:[%s478 + $0x90] sm:$0xff] %v2255
        %2301 = vst [vmem:[%s478 + $0x98] sm:$0xff] %v2257
        %2302 = vst [vmem:[%s478 + $0xa0] sm:$0xff] %v2259
        %2303 = vst [vmem:[%s478 + $0xa8] sm:$0xff] %v2261
        %2304 = vst [vmem:[%s478 + $0xb0] sm:$0xff] %v2263
        %2305 = vst [vmem:[%s478 + $0xb8] sm:$0xff] %v2265
        %2306 = vst [vmem:[%s478 + $0xc0] sm:$0xff] %v2267
        %2307 = vst [vmem:[%s478 + $0xc8] sm:$0xff] %v2269
        %2308 = vst [vmem:[%s478 + $0xd0] sm:$0xff] %v2271
        %2309 = vst [vmem:[%s478 + $0xd8] sm:$0xff] %v2273
        %2310 = vst [vmem:[%s478 + $0xe0] sm:$0xff] %v2275
        %2311 = vst [vmem:[%s478 + $0xe8] sm:$0xff] %v2277
        %2312 = vst [vmem:[%s478 + $0xf0] sm:$0xff] %v2279
        %2313 = vst [vmem:[%s478 + $0xf8] sm:$0xff] %v2281
        %s2314 = sand.u32 %s275, 1
        %s2315 = scalar_lea.sflag [#allocation4], %s2314
        %s2316 = sand.u32 %s275, 1
        %s2317 = smul.addr %s2316, 256
        %s2318 = scalar_lea.vmem [#allocation13], %s2317
        // Predicated region
        $region89: #{tpu_custom_call.1} parent=63 // pred_check
          %p2319 = pneg %p285
        $region90: #{tpu_custom_call.1} parent=63 // pred_check_branch
          %2321 = sbr.rel (%p2319) target = $region92
        $region91: #{tpu_custom_call.1} parent=63 // pred_region
          %s2322 = smul.u32 32, %s31
          %s2324 = ssub.s32 4096, 4096
          %2325 = vsyncadd %s2315, %s2324
          %s2326 = smul.addr %s2322, 128
          %s2327 = scalar_lea.hbm %s11, %s2326
          %s2328 = sshll.u32 %s2318, 4
          %s2329 = int_to_ptr.vmem [resolvable:$true] %s2328
          %2334 = dma.vmem_to_hbm [thread:$0]  %s2329, 4096, %s2327, %s2315, 128, 128, 8
        $region92: #{tpu_custom_call.1} parent=63 // pred_fallthru
          _
      $region64: #{tpu_custom_call.1} parent=5 // pred_fallthru
        _
      %p2335 = scmp.le.s32.totalorder 2, %s26
      // Predicated region
      $region93: #{tpu_custom_call.1} parent=5 // pred_check
        %p2336 = pneg %p2335
      $region94: #{tpu_custom_call.1} parent=5 // pred_check_branch
        %2338 = sbr.rel (%p2336) target = $region96
      $region95: #{tpu_custom_call.1} parent=5 // pred_region
        %s2339 = ssub.s32 %s26, 2
        // Predicated region
        $region97: #{tpu_custom_call.1} parent=95 // pred_check
          %p2340 = pneg %p291
        $region98: #{tpu_custom_call.1} parent=95 // pred_check_branch
          %2342 = sbr.rel (%p2340) target = $region100
        $region99: #{tpu_custom_call.1} parent=95 // pred_region
          %s2343 = sand.u32 %s276, 1
          %s2344 = scalar_lea.sflag [#allocation4], %s2343
          %s2345 = sand.u32 %s276, 1
          %s2346 = smul.addr %s2345, 256
          %s2347 = scalar_lea.vmem [#allocation13], %s2346
          %2348 = dma.done %s2344, 4096
        $region100: #{tpu_custom_call.1} parent=95 // pred_fallthru
          _
      $region96: #{tpu_custom_call.1} parent=5 // pred_fallthru
        _
    $region6: #{tpu_custom_call.1} parent=1 // loop_footer
      %s30 = sadd.s32 1, %s26
    $region7: #{tpu_custom_call.1} parent=1 // loop_footer_branch
      %25 = sbr.rel target = $region3
    $region8: #{tpu_custom_call.1} parent=1 // loop_exit
      _
    %2349 = vsyncpa [#allocation3], 1
    %s2350 = scalar_lea.sflag [#allocation3], 1
    %2351 = vsyncpa %s2350, 1
    %2352 = vsyncpa [#allocation6], 1
    %2353 = vsyncpa [#allocation9], 1
    %2354 = vsyncpa [#allocation12], 1
    %2355 = vsyncpa [#allocation4], 1
    %s2356 = scalar_lea.sflag [#allocation4], 1
    %2357 = vsyncpa %s2356, 1

</llo_original>
